<compile_context>
chip_gen: v5e
topology: v5e:2x2
jax: 0.10.0
libtpu: 0.0.40
codegen_flags: <defaults>
</compile_context>

<pallas_src>
import functools
import math

import jax
import jax.numpy as jnp
from jax import lax
from jax.experimental import pallas as pl
from jax.experimental.pallas import tpu as pltpu


def _dau_kernel(x_ref, wb1_ref, wb2_ref, wca1t_ref, wca2_ref, w1x1_ref,
                a_ref, wsa_ref, o_ref, *, H, W):
    # x_ref:    (1, C, H*W)   one image, channels on sublanes, pixels on lanes
    # wb1/wb2:  (C, 9*C)      im2col-packed 3x3 body conv weights (kh,kw,ci order)
    # wca1t:    (C, C//r)     transposed first CA 1x1 weight
    # wca2:     (C, C//r)     second CA 1x1 weight
    # w1x1:     (C, 2*C)      final fuse conv weight
    # a_ref:    (1,)  SMEM    PReLU slope
    # wsa_ref:  (50,) SMEM    5x5 spatial-attn weights, order (kh, kw, [max, mean])
    # o_ref:    (1, C, H*W)
    HW = H * W
    guard = ((2 * W + 2 + 127) // 128) * 128   # lane-aligned zero guard >= max tap shift

    x = x_ref[0].astype(jnp.float32)           # (C, HW)

    lane = lax.broadcasted_iota(jnp.int32, (1, HW), 1)
    col = lane % W                             # column index of every flattened pixel

    # Horizontal-wrap masks, computed once and shared by both 3x3 convs and the
    # 5x5 spatial-attention conv (avoids re-materializing iota/compares per tap).
    masks = {}
    for dw in (-2, -1, 1, 2):
        masks[dw] = (col < W - dw) if dw > 0 else (col >= -dw)

    def extend(slab):
        # [0 | slab | 0] along lanes; guard is a multiple of 128 (and HW is a
        # multiple of 128 here) so concat boundaries are lane-tile aligned.
        z = jnp.zeros((slab.shape[0], guard), jnp.float32)
        return jnp.concatenate([z, slab, z], axis=1)

    def tap(ext, dh, dw):
        # Zero-padded spatial shift by (dh, dw) of a flattened (rows, HW) slab.
        s = dh * W + dw
        v = ext[:, guard + s: guard + s + HW]
        if dw != 0:                            # mask horizontal wrap across rows
            v = jnp.where(masks[dw], v, 0.0)
        return v

    def conv3x3(slab, wmat):
        # "same" 3x3 conv as a single im2col matmul on the MXU.
        ext = extend(slab)
        taps = [tap(ext, kh - 1, kw - 1) for kh in range(3) for kw in range(3)]
        stack = jnp.concatenate(taps, axis=0)                  # (9*C, HW)
        return jnp.dot(wmat, stack, preferred_element_type=jnp.float32)

    # ---- body: conv3x3 -> PReLU -> conv3x3 ----------------------------------
    a = a_ref[0]
    t = conv3x3(x, wb1_ref[...])
    t = jnp.where(t >= 0, t, a * t)
    res = conv3x3(t, wb2_ref[...])

    # ---- spatial attention: 5x5 conv over [channel-max, channel-mean] -------
    mx = jnp.max(res, axis=0, keepdims=True)                   # (1, HW)
    mn = jnp.mean(res, axis=0, keepdims=True)                  # (1, HW)
    pooled = jnp.concatenate([mx, mn], axis=0)                 # (2, HW)
    ext_p = extend(pooled)
    sa_logit = jnp.zeros((1, HW), jnp.float32)
    for kh in range(5):
        for kw in range(5):
            ti = kh * 5 + kw
            t2 = tap(ext_p, kh - 2, kw - 2)                    # (2, HW)
            sa_logit = sa_logit + (wsa_ref[2 * ti] * t2[0:1]
                                   + wsa_ref[2 * ti + 1] * t2[1:2])
    sa = res * jax.nn.sigmoid(sa_logit)                        # (C, HW)

    # ---- channel attention: GAP -> 1x1 -> ReLU -> 1x1 -> sigmoid (VPU only) --
    gap = jnp.mean(res, axis=1, keepdims=True)                 # (C, 1)
    hid = jnp.sum(wca1t_ref[...] * gap, axis=0, keepdims=True)     # (1, C//r)
    hid = jnp.maximum(hid, 0.0)
    y = jnp.sum(wca2_ref[...] * hid, axis=1, keepdims=True)        # (C, 1)
    ca = res * jax.nn.sigmoid(y)                               # (C, HW)

    # ---- concat -> 1x1 fuse conv (MXU) -> residual ---------------------------
    cat = jnp.concatenate([sa, ca], axis=0)                    # (2C, HW)
    out = jnp.dot(w1x1_ref[...], cat, preferred_element_type=jnp.float32)
    o_ref[0] = (out + x).astype(o_ref.dtype)                   # lane-dense store


def dau_forward(x, w_body1, w_body2, a_prelu, w_sa, w_ca1, w_ca2, w_1x1):
    """x: (N, C, H, W); torch-layout weights (OIHW); PReLU slope a_prelu: (1,)."""
    n, c, h, w = x.shape
    hw = h * w
    cr = w_ca1.shape[0]

    # One-off parameter repacks (tiny).  No activation pad/transpose in HBM.
    wb1_mat = jnp.transpose(w_body1, (0, 2, 3, 1)).reshape(c, 9 * c)
    wb2_mat = jnp.transpose(w_body2, (0, 2, 3, 1)).reshape(c, 9 * c)
    wca1_t = jnp.transpose(w_ca1.reshape(cr, c))               # (c, cr)
    wca2_m = w_ca2.reshape(c, cr)                              # (c, cr)
    w1x1_m = w_1x1.reshape(c, 2 * c)                           # (c, 2c)
    wsa_flat = jnp.transpose(w_sa, (0, 2, 3, 1)).reshape(-1)   # (50,) (kh,kw,[max,mean])
    a_flat = a_prelu.reshape(1)

    x_flat = x.reshape(n, c, hw)      # contiguous merge of trailing dims

    kernel = functools.partial(_dau_kernel, H=h, W=w)
    smem = pl.BlockSpec(memory_space=pltpu.MemorySpace.SMEM)

    out_flat = pl.pallas_call(
        kernel,
        out_shape=jax.ShapeDtypeStruct((n, c, hw), x.dtype),
        grid_spec=pltpu.PrefetchScalarGridSpec(
            num_scalar_prefetch=0,
            grid=(n,),
            in_specs=[
                pl.BlockSpec((1, c, hw), lambda b: (b, 0, 0)),
                pl.BlockSpec((c, 9 * c), lambda b: (0, 0)),
                pl.BlockSpec((c, 9 * c), lambda b: (0, 0)),
                pl.BlockSpec((c, cr), lambda b: (0, 0)),
                pl.BlockSpec((c, cr), lambda b: (0, 0)),
                pl.BlockSpec((c, 2 * c), lambda b: (0, 0)),
                smem,   # PReLU slope (1,)
                smem,   # spatial-attn weights (50,)
            ],
            out_specs=pl.BlockSpec((1, c, hw), lambda b: (b, 0, 0)),
        ),
        compiler_params=pltpu.CompilerParams(
            dimension_semantics=("parallel",)),
    )(x_flat, wb1_mat, wb2_mat, wca1_t, wca2_m, w1x1_m, a_flat, wsa_flat)

    return out_flat.reshape(n, c, h, w)


# ----------------------------- pure-JAX reference -----------------------------
def _conv_ref(x, w, pad):
    return lax.conv_general_dilated(
        x, w, window_strides=(1, 1),
        padding=((pad, pad), (pad, pad)),
        dimension_numbers=("NCHW", "OIHW", "NCHW"),
        precision=lax.Precision.HIGHEST)


def _dau_reference(x, w_b1, w_b2, a, w_sa, w_ca1, w_ca2, w_1x1):
    t = _conv_ref(x, w_b1, 1)
    t = jnp.where(t >= 0, t, a[0] * t)                         # PReLU (scalar slope)
    res = _conv_ref(t, w_b2, 1)
    # spatial attention
    mx = jnp.max(res, axis=1, keepdims=True)
    mn = jnp.mean(res, axis=1, keepdims=True)
    pooled = jnp.concatenate([mx, mn], axis=1)
    sa = res * jax.nn.sigmoid(_conv_ref(pooled, w_sa, 2))
    # channel attention
    gap = jnp.mean(res, axis=(2, 3), keepdims=True)
    hid = jnp.maximum(_conv_ref(gap, w_ca1, 0), 0.0)
    ca = res * jax.nn.sigmoid(_conv_ref(hid, w_ca2, 0))
    # fuse + residual
    cat = jnp.concatenate([sa, ca], axis=1)
    return _conv_ref(cat, w_1x1, 0) + x


if __name__ == "__main__":
    N, C, H, W = 2, 16, 16, 16     # n_feat=16 so n_feat // reduction(8) = 2
    RED = 8
    CR = C // RED

    key = jax.random.PRNGKey(0)
    ks = jax.random.split(key, 7)

    def uinit(k, shape, fan_in):
        b = 1.0 / math.sqrt(fan_in)
        return jax.random.uniform(k, shape, jnp.float32, -b, b)

    x = jax.random.normal(ks[0], (N, C, H, W), jnp.float32)
    w_b1 = uinit(ks[1], (C, C, 3, 3), C * 9)
    w_b2 = uinit(ks[2], (C, C, 3, 3), C * 9)
    a_prelu = jnp.full((1,), 0.25, jnp.float32)    # nn.PReLU() default slope
    w_sa = uinit(ks[3], (1, 2, 5, 5), 2 * 25)
    w_ca1 = uinit(ks[4], (CR, C, 1, 1), C)
    w_ca2 = uinit(ks[5], (C, CR, 1, 1), CR)
    w_1x1 = uinit(ks[6], (C, 2 * C, 1, 1), 2 * C)

    out = dau_forward(x, w_b1, w_b2, a_prelu, w_sa, w_ca1, w_ca2, w_1x1)
    out = jax.block_until_ready(out)

    ref = _dau_reference(x, w_b1, w_b2, a_prelu, w_sa, w_ca1, w_ca2, w_1x1)
    assert out.shape == (N, C, H, W), out.shape
    err = float(jnp.max(jnp.abs(out - ref)))
    assert err < 5e-3, f"max abs err {err}"

    print("KERNEL_OK")
</pallas_src>

<mosaic_0001>
module attributes {stable_mosaic.version = 11 : i64} {
  func.func @_dau_kernel(%arg0: i32, %arg1: memref<1x16x256xf32, #tpu.memory_space<vmem>>, %arg2: memref<16x144xf32, #tpu.memory_space<vmem>>, %arg3: memref<16x144xf32, #tpu.memory_space<vmem>>, %arg4: memref<16x2xf32, #tpu.memory_space<vmem>>, %arg5: memref<16x2xf32, #tpu.memory_space<vmem>>, %arg6: memref<16x32xf32, #tpu.memory_space<vmem>>, %arg7: memref<1xf32, #tpu.memory_space<smem>>, %arg8: memref<50xf32, #tpu.memory_space<smem>>, %arg9: memref<1x16x256xf32, #tpu.memory_space<vmem>>) attributes {dimension_semantics = [#tpu.dimension_semantics<parallel>], iteration_bounds = array<i64: 2>, scalar_prefetch = 0 : i64, scratch_operands = 0 : i64, tpu.core_type = #tpu.core_type<tc>, window_params = [{transform_indices = @transform_0, window_bounds = array<i64: 1, 16, 256>}, {pipeline_mode = #tpu.pipeline_mode<synchronous>, transform_indices = @transform_1, window_bounds = array<i64: 16, 144>}, {pipeline_mode = #tpu.pipeline_mode<synchronous>, transform_indices = @transform_2, window_bounds = array<i64: 16, 144>}, {pipeline_mode = #tpu.pipeline_mode<synchronous>, transform_indices = @transform_3, window_bounds = array<i64: 16, 2>}, {pipeline_mode = #tpu.pipeline_mode<synchronous>, transform_indices = @transform_4, window_bounds = array<i64: 16, 2>}, {pipeline_mode = #tpu.pipeline_mode<synchronous>, transform_indices = @transform_5, window_bounds = array<i64: 16, 32>}, {transform_indices = @transform_6, window_bounds = array<i64: 1>}, {transform_indices = @transform_7, window_bounds = array<i64: 50>}, {transform_indices = @transform_8, window_bounds = array<i64: 1, 16, 256>}]} {
    %c0 = arith.constant 0 : index
    %c0_0 = arith.constant 0 : index
    %c0_1 = arith.constant 0 : index
    %0 = vector.load %arg1[%c0, %c0_0, %c0_1] : memref<1x16x256xf32, #tpu.memory_space<vmem>>, vector<1x16x256xf32>
    %1 = vector.shape_cast %0 : vector<1x16x256xf32> to vector<16x256xf32>
    %2 = tpu.iota {dimensions = array<i32: 1>} : vector<1x256xi32>
    %c16_i32 = arith.constant 16 : i32
    %c0_i32 = arith.constant 0 : i32
    %3 = arith.cmpi eq, %c16_i32, %c0_i32 : i32
    %c1_i32 = arith.constant 1 : i32
    %4 = arith.select %3, %c1_i32, %c16_i32 : i32
    %5 = vector.broadcast %4 : i32 to vector<1x256xi32>
    %6 = arith.remsi %2, %5 : vector<1x256xi32>
    %c0_i32_2 = arith.constant 0 : i32
    %7 = vector.broadcast %c0_i32_2 : i32 to vector<1x256xi32>
    %8 = arith.cmpi ne, %6, %7 : vector<1x256xi32>
    %c0_i32_3 = arith.constant 0 : i32
    %9 = vector.broadcast %c0_i32_3 : i32 to vector<1x256xi32>
    %10 = arith.cmpi slt, %6, %9 : vector<1x256xi32>
    %c0_i32_4 = arith.constant 0 : i32
    %11 = arith.cmpi slt, %4, %c0_i32_4 : i32
    %12 = vector.broadcast %11 : i1 to vector<1x256xi1>
    %13 = vector.broadcast %12 : vector<1x256xi1> to vector<1x256xi1>
    %14 = arith.xori %10, %13 : vector<1x256xi1>
    %15 = arith.andi %14, %8 : vector<1x256xi1>
    %16 = vector.broadcast %4 : i32 to vector<1x256xi32>
    %17 = arith.addi %6, %16 : vector<1x256xi32>
    %18 = arith.select %15, %17, %6 : vector<1x256xi1>, vector<1x256xi32>
    %c2_i32 = arith.constant 2 : i32
    %19 = vector.broadcast %c2_i32 : i32 to vector<1x256xi32>
    %20 = arith.cmpi sge, %18, %19 : vector<1x256xi32>
    %c1_i32_5 = arith.constant 1 : i32
    %21 = vector.broadcast %c1_i32_5 : i32 to vector<1x256xi32>
    %22 = arith.cmpi sge, %18, %21 : vector<1x256xi32>
    %c15_i32 = arith.constant 15 : i32
    %23 = vector.broadcast %c15_i32 : i32 to vector<1x256xi32>
    %24 = arith.cmpi slt, %18, %23 : vector<1x256xi32>
    %c14_i32 = arith.constant 14 : i32
    %25 = vector.broadcast %c14_i32 : i32 to vector<1x256xi32>
    %26 = arith.cmpi slt, %18, %25 : vector<1x256xi32>
    %c0_6 = arith.constant 0 : index
    %27 = memref.load %arg7[%c0_6] : memref<1xf32, #tpu.memory_space<smem>>
    %c0_7 = arith.constant 0 : index
    %c0_8 = arith.constant 0 : index
    %28 = vector.load %arg2[%c0_7, %c0_8] : memref<16x144xf32, #tpu.memory_space<vmem>>, vector<16x144xf32>
    %cst = arith.constant 0.000000e+00 : f32
    %29 = vector.broadcast %cst : f32 to vector<16x128xf32>
    %30 = tpu.concatenate %29, %1, %29 in 1 : vector<16x128xf32>, vector<16x256xf32>, vector<16x128xf32> -> vector<16x512xf32>
    %31 = vector.extract_strided_slice %30 {offsets = [0, 111], sizes = [16, 256], strides = [1, 1]} : vector<16x512xf32> to vector<16x256xf32>
    %cst_9 = arith.constant 0.000000e+00 : f32
    %32 = vector.shape_cast %22 : vector<1x256xi1> to vector<1x256xi1>
    %33 = vector.broadcast %32 : vector<1x256xi1> to vector<16x256xi1>
    %34 = vector.broadcast %cst_9 : f32 to vector<16x256xf32>
    %35 = arith.select %33, %31, %34 : vector<16x256xi1>, vector<16x256xf32>
    %36 = vector.extract_strided_slice %30 {offsets = [0, 112], sizes = [16, 256], strides = [1, 1]} : vector<16x512xf32> to vector<16x256xf32>
    %37 = vector.extract_strided_slice %30 {offsets = [0, 113], sizes = [16, 256], strides = [1, 1]} : vector<16x512xf32> to vector<16x256xf32>
    %cst_10 = arith.constant 0.000000e+00 : f32
    %38 = vector.shape_cast %24 : vector<1x256xi1> to vector<1x256xi1>
    %39 = vector.broadcast %38 : vector<1x256xi1> to vector<16x256xi1>
    %40 = vector.broadcast %cst_10 : f32 to vector<16x256xf32>
    %41 = arith.select %39, %37, %40 : vector<16x256xi1>, vector<16x256xf32>
    %42 = vector.extract_strided_slice %30 {offsets = [0, 127], sizes = [16, 256], strides = [1, 1]} : vector<16x512xf32> to vector<16x256xf32>
    %cst_11 = arith.constant 0.000000e+00 : f32
    %43 = vector.shape_cast %22 : vector<1x256xi1> to vector<1x256xi1>
    %44 = vector.broadcast %43 : vector<1x256xi1> to vector<16x256xi1>
    %45 = vector.broadcast %cst_11 : f32 to vector<16x256xf32>
    %46 = arith.select %44, %42, %45 : vector<16x256xi1>, vector<16x256xf32>
    %47 = vector.extract_strided_slice %30 {offsets = [0, 128], sizes = [16, 256], strides = [1, 1]} : vector<16x512xf32> to vector<16x256xf32>
    %48 = vector.extract_strided_slice %30 {offsets = [0, 129], sizes = [16, 256], strides = [1, 1]} : vector<16x512xf32> to vector<16x256xf32>
    %cst_12 = arith.constant 0.000000e+00 : f32
    %49 = vector.shape_cast %24 : vector<1x256xi1> to vector<1x256xi1>
    %50 = vector.broadcast %49 : vector<1x256xi1> to vector<16x256xi1>
    %51 = vector.broadcast %cst_12 : f32 to vector<16x256xf32>
    %52 = arith.select %50, %48, %51 : vector<16x256xi1>, vector<16x256xf32>
    %53 = vector.extract_strided_slice %30 {offsets = [0, 143], sizes = [16, 256], strides = [1, 1]} : vector<16x512xf32> to vector<16x256xf32>
    %cst_13 = arith.constant 0.000000e+00 : f32
    %54 = vector.shape_cast %22 : vector<1x256xi1> to vector<1x256xi1>
    %55 = vector.broadcast %54 : vector<1x256xi1> to vector<16x256xi1>
    %56 = vector.broadcast %cst_13 : f32 to vector<16x256xf32>
    %57 = arith.select %55, %53, %56 : vector<16x256xi1>, vector<16x256xf32>
    %58 = vector.extract_strided_slice %30 {offsets = [0, 144], sizes = [16, 256], strides = [1, 1]} : vector<16x512xf32> to vector<16x256xf32>
    %59 = vector.extract_strided_slice %30 {offsets = [0, 145], sizes = [16, 256], strides = [1, 1]} : vector<16x512xf32> to vector<16x256xf32>
    %cst_14 = arith.constant 0.000000e+00 : f32
    %60 = vector.shape_cast %24 : vector<1x256xi1> to vector<1x256xi1>
    %61 = vector.broadcast %60 : vector<1x256xi1> to vector<16x256xi1>
    %62 = vector.broadcast %cst_14 : f32 to vector<16x256xf32>
    %63 = arith.select %61, %59, %62 : vector<16x256xi1>, vector<16x256xf32>
    %64 = tpu.concatenate %35, %36, %41, %46, %47, %52, %57, %58, %63 in 0 : vector<16x256xf32>, vector<16x256xf32>, vector<16x256xf32>, vector<16x256xf32>, vector<16x256xf32>, vector<16x256xf32>, vector<16x256xf32>, vector<16x256xf32>, vector<16x256xf32> -> vector<144x256xf32>
    %cst_15 = arith.constant dense<0.000000e+00> : vector<16x256xf32>
    %65 = tpu.matmul %28, %64, %cst_15 {dimension_numbers = #tpu.dot_dimension_numbers<[1], [0], [0], [1], [0, 0, 1, 1], [], []>} : vector<16x144xf32>, vector<144x256xf32>, vector<16x256xf32> -> vector<16x256xf32>
    %cst_16 = arith.constant 0.000000e+00 : f32
    %66 = vector.broadcast %cst_16 : f32 to vector<16x256xf32>
    %67 = arith.cmpf oge, %65, %66 : vector<16x256xf32>
    %68 = vector.broadcast %27 : f32 to vector<16x256xf32>
    %69 = arith.mulf %68, %65 : vector<16x256xf32>
    %70 = arith.select %67, %65, %69 : vector<16x256xi1>, vector<16x256xf32>
    %c0_17 = arith.constant 0 : index
    %c0_18 = arith.constant 0 : index
    %71 = vector.load %arg3[%c0_17, %c0_18] : memref<16x144xf32, #tpu.memory_space<vmem>>, vector<16x144xf32>
    %cst_19 = arith.constant 0.000000e+00 : f32
    %72 = vector.broadcast %cst_19 : f32 to vector<16x128xf32>
    %73 = tpu.concatenate %72, %70, %72 in 1 : vector<16x128xf32>, vector<16x256xf32>, vector<16x128xf32> -> vector<16x512xf32>
    %74 = vector.extract_strided_slice %73 {offsets = [0, 111], sizes = [16, 256], strides = [1, 1]} : vector<16x512xf32> to vector<16x256xf32>
    %cst_20 = arith.constant 0.000000e+00 : f32
    %75 = vector.shape_cast %22 : vector<1x256xi1> to vector<1x256xi1>
    %76 = vector.broadcast %75 : vector<1x256xi1> to vector<16x256xi1>
    %77 = vector.broadcast %cst_20 : f32 to vector<16x256xf32>
    %78 = arith.select %76, %74, %77 : vector<16x256xi1>, vector<16x256xf32>
    %79 = vector.extract_strided_slice %73 {offsets = [0, 112], sizes = [16, 256], strides = [1, 1]} : vector<16x512xf32> to vector<16x256xf32>
    %80 = vector.extract_strided_slice %73 {offsets = [0, 113], sizes = [16, 256], strides = [1, 1]} : vector<16x512xf32> to vector<16x256xf32>
    %cst_21 = arith.constant 0.000000e+00 : f32
    %81 = vector.shape_cast %24 : vector<1x256xi1> to vector<1x256xi1>
    %82 = vector.broadcast %81 : vector<1x256xi1> to vector<16x256xi1>
    %83 = vector.broadcast %cst_21 : f32 to vector<16x256xf32>
    %84 = arith.select %82, %80, %83 : vector<16x256xi1>, vector<16x256xf32>
    %85 = vector.extract_strided_slice %73 {offsets = [0, 127], sizes = [16, 256], strides = [1, 1]} : vector<16x512xf32> to vector<16x256xf32>
    %cst_22 = arith.constant 0.000000e+00 : f32
    %86 = vector.shape_cast %22 : vector<1x256xi1> to vector<1x256xi1>
    %87 = vector.broadcast %86 : vector<1x256xi1> to vector<16x256xi1>
    %88 = vector.broadcast %cst_22 : f32 to vector<16x256xf32>
    %89 = arith.select %87, %85, %88 : vector<16x256xi1>, vector<16x256xf32>
    %90 = vector.extract_strided_slice %73 {offsets = [0, 128], sizes = [16, 256], strides = [1, 1]} : vector<16x512xf32> to vector<16x256xf32>
    %91 = vector.extract_strided_slice %73 {offsets = [0, 129], sizes = [16, 256], strides = [1, 1]} : vector<16x512xf32> to vector<16x256xf32>
    %cst_23 = arith.constant 0.000000e+00 : f32
    %92 = vector.shape_cast %24 : vector<1x256xi1> to vector<1x256xi1>
    %93 = vector.broadcast %92 : vector<1x256xi1> to vector<16x256xi1>
    %94 = vector.broadcast %cst_23 : f32 to vector<16x256xf32>
    %95 = arith.select %93, %91, %94 : vector<16x256xi1>, vector<16x256xf32>
    %96 = vector.extract_strided_slice %73 {offsets = [0, 143], sizes = [16, 256], strides = [1, 1]} : vector<16x512xf32> to vector<16x256xf32>
    %cst_24 = arith.constant 0.000000e+00 : f32
    %97 = vector.shape_cast %22 : vector<1x256xi1> to vector<1x256xi1>
    %98 = vector.broadcast %97 : vector<1x256xi1> to vector<16x256xi1>
    %99 = vector.broadcast %cst_24 : f32 to vector<16x256xf32>
    %100 = arith.select %98, %96, %99 : vector<16x256xi1>, vector<16x256xf32>
    %101 = vector.extract_strided_slice %73 {offsets = [0, 144], sizes = [16, 256], strides = [1, 1]} : vector<16x512xf32> to vector<16x256xf32>
    %102 = vector.extract_strided_slice %73 {offsets = [0, 145], sizes = [16, 256], strides = [1, 1]} : vector<16x512xf32> to vector<16x256xf32>
    %cst_25 = arith.constant 0.000000e+00 : f32
    %103 = vector.shape_cast %24 : vector<1x256xi1> to vector<1x256xi1>
    %104 = vector.broadcast %103 : vector<1x256xi1> to vector<16x256xi1>
    %105 = vector.broadcast %cst_25 : f32 to vector<16x256xf32>
    %106 = arith.select %104, %102, %105 : vector<16x256xi1>, vector<16x256xf32>
    %107 = tpu.concatenate %78, %79, %84, %89, %90, %95, %100, %101, %106 in 0 : vector<16x256xf32>, vector<16x256xf32>, vector<16x256xf32>, vector<16x256xf32>, vector<16x256xf32>, vector<16x256xf32>, vector<16x256xf32>, vector<16x256xf32>, vector<16x256xf32> -> vector<144x256xf32>
    %cst_26 = arith.constant dense<0.000000e+00> : vector<16x256xf32>
    %108 = tpu.matmul %71, %107, %cst_26 {dimension_numbers = #tpu.dot_dimension_numbers<[1], [0], [0], [1], [0, 0, 1, 1], [], []>} : vector<16x144xf32>, vector<144x256xf32>, vector<16x256xf32> -> vector<16x256xf32>
    %cst_27 = arith.constant dense<0xFF800000> : vector<256xf32>
    %109 = vector.multi_reduction <maximumf>, %108, %cst_27 [0] : vector<16x256xf32> to vector<256xf32>
    %110 = vector.shape_cast %109 : vector<256xf32> to vector<1x256xf32>
    %cst_28 = arith.constant dense<0.000000e+00> : vector<256xf32>
    %111 = vector.multi_reduction <add>, %108, %cst_28 [0] : vector<16x256xf32> to vector<256xf32>
    %112 = vector.shape_cast %111 : vector<256xf32> to vector<1x256xf32>
    %cst_29 = arith.constant 1.600000e+01 : f32
    %113 = vector.broadcast %cst_29 : f32 to vector<1x256xf32>
    %114 = arith.divf %112, %113 : vector<1x256xf32>
    %115 = tpu.concatenate %110, %114 in 0 : vector<1x256xf32>, vector<1x256xf32> -> vector<2x256xf32>
    %cst_30 = arith.constant 0.000000e+00 : f32
    %116 = vector.broadcast %cst_30 : f32 to vector<2x128xf32>
    %117 = tpu.concatenate %116, %115, %116 in 1 : vector<2x128xf32>, vector<2x256xf32>, vector<2x128xf32> -> vector<2x512xf32>
    %cst_31 = arith.constant 0.000000e+00 : f32
    %118 = vector.broadcast %cst_31 : f32 to vector<1x256xf32>
    %119 = vector.extract_strided_slice %117 {offsets = [0, 94], sizes = [2, 256], strides = [1, 1]} : vector<2x512xf32> to vector<2x256xf32>
    %cst_32 = arith.constant 0.000000e+00 : f32
    %120 = vector.shape_cast %20 : vector<1x256xi1> to vector<1x256xi1>
    %121 = vector.broadcast %120 : vector<1x256xi1> to vector<2x256xi1>
    %122 = vector.broadcast %cst_32 : f32 to vector<2x256xf32>
    %123 = arith.select %121, %119, %122 : vector<2x256xi1>, vector<2x256xf32>
    %c0_33 = arith.constant 0 : index
    %124 = memref.load %arg8[%c0_33] : memref<50xf32, #tpu.memory_space<smem>>
    %125 = vector.extract_strided_slice %123 {offsets = [0, 0], sizes = [1, 256], strides = [1, 1]} : vector<2x256xf32> to vector<1x256xf32>
    %126 = vector.broadcast %124 : f32 to vector<1x256xf32>
    %127 = arith.mulf %126, %125 : vector<1x256xf32>
    %c1 = arith.constant 1 : index
    %128 = memref.load %arg8[%c1] : memref<50xf32, #tpu.memory_space<smem>>
    %129 = vector.extract_strided_slice %123 {offsets = [1, 0], sizes = [1, 256], strides = [1, 1]} : vector<2x256xf32> to vector<1x256xf32>
    %130 = vector.broadcast %128 : f32 to vector<1x256xf32>
    %131 = arith.mulf %130, %129 : vector<1x256xf32>
    %132 = arith.addf %127, %131 : vector<1x256xf32>
    %133 = arith.addf %118, %132 : vector<1x256xf32>
    %134 = vector.extract_strided_slice %117 {offsets = [0, 95], sizes = [2, 256], strides = [1, 1]} : vector<2x512xf32> to vector<2x256xf32>
    %cst_34 = arith.constant 0.000000e+00 : f32
    %135 = vector.shape_cast %22 : vector<1x256xi1> to vector<1x256xi1>
    %136 = vector.broadcast %135 : vector<1x256xi1> to vector<2x256xi1>
    %137 = vector.broadcast %cst_34 : f32 to vector<2x256xf32>
    %138 = arith.select %136, %134, %137 : vector<2x256xi1>, vector<2x256xf32>
    %c2 = arith.constant 2 : index
    %139 = memref.load %arg8[%c2] : memref<50xf32, #tpu.memory_space<smem>>
    %140 = vector.extract_strided_slice %138 {offsets = [0, 0], sizes = [1, 256], strides = [1, 1]} : vector<2x256xf32> to vector<1x256xf32>
    %141 = vector.broadcast %139 : f32 to vector<1x256xf32>
    %142 = arith.mulf %141, %140 : vector<1x256xf32>
    %c3 = arith.constant 3 : index
    %143 = memref.load %arg8[%c3] : memref<50xf32, #tpu.memory_space<smem>>
    %144 = vector.extract_strided_slice %138 {offsets = [1, 0], sizes = [1, 256], strides = [1, 1]} : vector<2x256xf32> to vector<1x256xf32>
    %145 = vector.broadcast %143 : f32 to vector<1x256xf32>
    %146 = arith.mulf %145, %144 : vector<1x256xf32>
    %147 = arith.addf %142, %146 : vector<1x256xf32>
    %148 = arith.addf %133, %147 : vector<1x256xf32>
    %149 = vector.extract_strided_slice %117 {offsets = [0, 96], sizes = [2, 256], strides = [1, 1]} : vector<2x512xf32> to vector<2x256xf32>
    %c4 = arith.constant 4 : index
    %150 = memref.load %arg8[%c4] : memref<50xf32, #tpu.memory_space<smem>>
    %151 = vector.extract_strided_slice %149 {offsets = [0, 0], sizes = [1, 256], strides = [1, 1]} : vector<2x256xf32> to vector<1x256xf32>
    %152 = vector.broadcast %150 : f32 to vector<1x256xf32>
    %153 = arith.mulf %152, %151 : vector<1x256xf32>
    %c5 = arith.constant 5 : index
    %154 = memref.load %arg8[%c5] : memref<50xf32, #tpu.memory_space<smem>>
    %155 = vector.extract_strided_slice %149 {offsets = [1, 0], sizes = [1, 256], strides = [1, 1]} : vector<2x256xf32> to vector<1x256xf32>
    %156 = vector.broadcast %154 : f32 to vector<1x256xf32>
    %157 = arith.mulf %156, %155 : vector<1x256xf32>
    %158 = arith.addf %153, %157 : vector<1x256xf32>
    %159 = arith.addf %148, %158 : vector<1x256xf32>
    %160 = vector.extract_strided_slice %117 {offsets = [0, 97], sizes = [2, 256], strides = [1, 1]} : vector<2x512xf32> to vector<2x256xf32>
    %cst_35 = arith.constant 0.000000e+00 : f32
    %161 = vector.shape_cast %24 : vector<1x256xi1> to vector<1x256xi1>
    %162 = vector.broadcast %161 : vector<1x256xi1> to vector<2x256xi1>
    %163 = vector.broadcast %cst_35 : f32 to vector<2x256xf32>
    %164 = arith.select %162, %160, %163 : vector<2x256xi1>, vector<2x256xf32>
    %c6 = arith.constant 6 : index
    %165 = memref.load %arg8[%c6] : memref<50xf32, #tpu.memory_space<smem>>
    %166 = vector.extract_strided_slice %164 {offsets = [0, 0], sizes = [1, 256], strides = [1, 1]} : vector<2x256xf32> to vector<1x256xf32>
    %167 = vector.broadcast %165 : f32 to vector<1x256xf32>
    %168 = arith.mulf %167, %166 : vector<1x256xf32>
    %c7 = arith.constant 7 : index
    %169 = memref.load %arg8[%c7] : memref<50xf32, #tpu.memory_space<smem>>
    %170 = vector.extract_strided_slice %164 {offsets = [1, 0], sizes = [1, 256], strides = [1, 1]} : vector<2x256xf32> to vector<1x256xf32>
    %171 = vector.broadcast %169 : f32 to vector<1x256xf32>
    %172 = arith.mulf %171, %170 : vector<1x256xf32>
    %173 = arith.addf %168, %172 : vector<1x256xf32>
    %174 = arith.addf %159, %173 : vector<1x256xf32>
    %175 = vector.extract_strided_slice %117 {offsets = [0, 98], sizes = [2, 256], strides = [1, 1]} : vector<2x512xf32> to vector<2x256xf32>
    %cst_36 = arith.constant 0.000000e+00 : f32
    %176 = vector.shape_cast %26 : vector<1x256xi1> to vector<1x256xi1>
    %177 = vector.broadcast %176 : vector<1x256xi1> to vector<2x256xi1>
    %178 = vector.broadcast %cst_36 : f32 to vector<2x256xf32>
    %179 = arith.select %177, %175, %178 : vector<2x256xi1>, vector<2x256xf32>
    %c8 = arith.constant 8 : index
    %180 = memref.load %arg8[%c8] : memref<50xf32, #tpu.memory_space<smem>>
    %181 = vector.extract_strided_slice %179 {offsets = [0, 0], sizes = [1, 256], strides = [1, 1]} : vector<2x256xf32> to vector<1x256xf32>
    %182 = vector.broadcast %180 : f32 to vector<1x256xf32>
    %183 = arith.mulf %182, %181 : vector<1x256xf32>
    %c9 = arith.constant 9 : index
    %184 = memref.load %arg8[%c9] : memref<50xf32, #tpu.memory_space<smem>>
    %185 = vector.extract_strided_slice %179 {offsets = [1, 0], sizes = [1, 256], strides = [1, 1]} : vector<2x256xf32> to vector<1x256xf32>
    %186 = vector.broadcast %184 : f32 to vector<1x256xf32>
    %187 = arith.mulf %186, %185 : vector<1x256xf32>
    %188 = arith.addf %183, %187 : vector<1x256xf32>
    %189 = arith.addf %174, %188 : vector<1x256xf32>
    %190 = vector.extract_strided_slice %117 {offsets = [0, 110], sizes = [2, 256], strides = [1, 1]} : vector<2x512xf32> to vector<2x256xf32>
    %cst_37 = arith.constant 0.000000e+00 : f32
    %191 = vector.shape_cast %20 : vector<1x256xi1> to vector<1x256xi1>
    %192 = vector.broadcast %191 : vector<1x256xi1> to vector<2x256xi1>
    %193 = vector.broadcast %cst_37 : f32 to vector<2x256xf32>
    %194 = arith.select %192, %190, %193 : vector<2x256xi1>, vector<2x256xf32>
    %c10 = arith.constant 10 : index
    %195 = memref.load %arg8[%c10] : memref<50xf32, #tpu.memory_space<smem>>
    %196 = vector.extract_strided_slice %194 {offsets = [0, 0], sizes = [1, 256], strides = [1, 1]} : vector<2x256xf32> to vector<1x256xf32>
    %197 = vector.broadcast %195 : f32 to vector<1x256xf32>
    %198 = arith.mulf %197, %196 : vector<1x256xf32>
    %c11 = arith.constant 11 : index
    %199 = memref.load %arg8[%c11] : memref<50xf32, #tpu.memory_space<smem>>
    %200 = vector.extract_strided_slice %194 {offsets = [1, 0], sizes = [1, 256], strides = [1, 1]} : vector<2x256xf32> to vector<1x256xf32>
    %201 = vector.broadcast %199 : f32 to vector<1x256xf32>
    %202 = arith.mulf %201, %200 : vector<1x256xf32>
    %203 = arith.addf %198, %202 : vector<1x256xf32>
    %204 = arith.addf %189, %203 : vector<1x256xf32>
    %205 = vector.extract_strided_slice %117 {offsets = [0, 111], sizes = [2, 256], strides = [1, 1]} : vector<2x512xf32> to vector<2x256xf32>
    %cst_38 = arith.constant 0.000000e+00 : f32
    %206 = vector.shape_cast %22 : vector<1x256xi1> to vector<1x256xi1>
    %207 = vector.broadcast %206 : vector<1x256xi1> to vector<2x256xi1>
    %208 = vector.broadcast %cst_38 : f32 to vector<2x256xf32>
    %209 = arith.select %207, %205, %208 : vector<2x256xi1>, vector<2x256xf32>
    %c12 = arith.constant 12 : index
    %210 = memref.load %arg8[%c12] : memref<50xf32, #tpu.memory_space<smem>>
    %211 = vector.extract_strided_slice %209 {offsets = [0, 0], sizes = [1, 256], strides = [1, 1]} : vector<2x256xf32> to vector<1x256xf32>
    %212 = vector.broadcast %210 : f32 to vector<1x256xf32>
    %213 = arith.mulf %212, %211 : vector<1x256xf32>
    %c13 = arith.constant 13 : index
    %214 = memref.load %arg8[%c13] : memref<50xf32, #tpu.memory_space<smem>>
    %215 = vector.extract_strided_slice %209 {offsets = [1, 0], sizes = [1, 256], strides = [1, 1]} : vector<2x256xf32> to vector<1x256xf32>
    %216 = vector.broadcast %214 : f32 to vector<1x256xf32>
    %217 = arith.mulf %216, %215 : vector<1x256xf32>
    %218 = arith.addf %213, %217 : vector<1x256xf32>
    %219 = arith.addf %204, %218 : vector<1x256xf32>
    %220 = vector.extract_strided_slice %117 {offsets = [0, 112], sizes = [2, 256], strides = [1, 1]} : vector<2x512xf32> to vector<2x256xf32>
    %c14 = arith.constant 14 : index
    %221 = memref.load %arg8[%c14] : memref<50xf32, #tpu.memory_space<smem>>
    %222 = vector.extract_strided_slice %220 {offsets = [0, 0], sizes = [1, 256], strides = [1, 1]} : vector<2x256xf32> to vector<1x256xf32>
    %223 = vector.broadcast %221 : f32 to vector<1x256xf32>
    %224 = arith.mulf %223, %222 : vector<1x256xf32>
    %c15 = arith.constant 15 : index
    %225 = memref.load %arg8[%c15] : memref<50xf32, #tpu.memory_space<smem>>
    %226 = vector.extract_strided_slice %220 {offsets = [1, 0], sizes = [1, 256], strides = [1, 1]} : vector<2x256xf32> to vector<1x256xf32>
    %227 = vector.broadcast %225 : f32 to vector<1x256xf32>
    %228 = arith.mulf %227, %226 : vector<1x256xf32>
    %229 = arith.addf %224, %228 : vector<1x256xf32>
    %230 = arith.addf %219, %229 : vector<1x256xf32>
    %231 = vector.extract_strided_slice %117 {offsets = [0, 113], sizes = [2, 256], strides = [1, 1]} : vector<2x512xf32> to vector<2x256xf32>
    %cst_39 = arith.constant 0.000000e+00 : f32
    %232 = vector.shape_cast %24 : vector<1x256xi1> to vector<1x256xi1>
    %233 = vector.broadcast %232 : vector<1x256xi1> to vector<2x256xi1>
    %234 = vector.broadcast %cst_39 : f32 to vector<2x256xf32>
    %235 = arith.select %233, %231, %234 : vector<2x256xi1>, vector<2x256xf32>
    %c16 = arith.constant 16 : index
    %236 = memref.load %arg8[%c16] : memref<50xf32, #tpu.memory_space<smem>>
    %237 = vector.extract_strided_slice %235 {offsets = [0, 0], sizes = [1, 256], strides = [1, 1]} : vector<2x256xf32> to vector<1x256xf32>
    %238 = vector.broadcast %236 : f32 to vector<1x256xf32>
    %239 = arith.mulf %238, %237 : vector<1x256xf32>
    %c17 = arith.constant 17 : index
    %240 = memref.load %arg8[%c17] : memref<50xf32, #tpu.memory_space<smem>>
    %241 = vector.extract_strided_slice %235 {offsets = [1, 0], sizes = [1, 256], strides = [1, 1]} : vector<2x256xf32> to vector<1x256xf32>
    %242 = vector.broadcast %240 : f32 to vector<1x256xf32>
    %243 = arith.mulf %242, %241 : vector<1x256xf32>
    %244 = arith.addf %239, %243 : vector<1x256xf32>
    %245 = arith.addf %230, %244 : vector<1x256xf32>
    %246 = vector.extract_strided_slice %117 {offsets = [0, 114], sizes = [2, 256], strides = [1, 1]} : vector<2x512xf32> to vector<2x256xf32>
    %cst_40 = arith.constant 0.000000e+00 : f32
    %247 = vector.shape_cast %26 : vector<1x256xi1> to vector<1x256xi1>
    %248 = vector.broadcast %247 : vector<1x256xi1> to vector<2x256xi1>
    %249 = vector.broadcast %cst_40 : f32 to vector<2x256xf32>
    %250 = arith.select %248, %246, %249 : vector<2x256xi1>, vector<2x256xf32>
    %c18 = arith.constant 18 : index
    %251 = memref.load %arg8[%c18] : memref<50xf32, #tpu.memory_space<smem>>
    %252 = vector.extract_strided_slice %250 {offsets = [0, 0], sizes = [1, 256], strides = [1, 1]} : vector<2x256xf32> to vector<1x256xf32>
    %253 = vector.broadcast %251 : f32 to vector<1x256xf32>
    %254 = arith.mulf %253, %252 : vector<1x256xf32>
    %c19 = arith.constant 19 : index
    %255 = memref.load %arg8[%c19] : memref<50xf32, #tpu.memory_space<smem>>
    %256 = vector.extract_strided_slice %250 {offsets = [1, 0], sizes = [1, 256], strides = [1, 1]} : vector<2x256xf32> to vector<1x256xf32>
    %257 = vector.broadcast %255 : f32 to vector<1x256xf32>
    %258 = arith.mulf %257, %256 : vector<1x256xf32>
    %259 = arith.addf %254, %258 : vector<1x256xf32>
    %260 = arith.addf %245, %259 : vector<1x256xf32>
    %261 = vector.extract_strided_slice %117 {offsets = [0, 126], sizes = [2, 256], strides = [1, 1]} : vector<2x512xf32> to vector<2x256xf32>
    %cst_41 = arith.constant 0.000000e+00 : f32
    %262 = vector.shape_cast %20 : vector<1x256xi1> to vector<1x256xi1>
    %263 = vector.broadcast %262 : vector<1x256xi1> to vector<2x256xi1>
    %264 = vector.broadcast %cst_41 : f32 to vector<2x256xf32>
    %265 = arith.select %263, %261, %264 : vector<2x256xi1>, vector<2x256xf32>
    %c20 = arith.constant 20 : index
    %266 = memref.load %arg8[%c20] : memref<50xf32, #tpu.memory_space<smem>>
    %267 = vector.extract_strided_slice %265 {offsets = [0, 0], sizes = [1, 256], strides = [1, 1]} : vector<2x256xf32> to vector<1x256xf32>
    %268 = vector.broadcast %266 : f32 to vector<1x256xf32>
    %269 = arith.mulf %268, %267 : vector<1x256xf32>
    %c21 = arith.constant 21 : index
    %270 = memref.load %arg8[%c21] : memref<50xf32, #tpu.memory_space<smem>>
    %271 = vector.extract_strided_slice %265 {offsets = [1, 0], sizes = [1, 256], strides = [1, 1]} : vector<2x256xf32> to vector<1x256xf32>
    %272 = vector.broadcast %270 : f32 to vector<1x256xf32>
    %273 = arith.mulf %272, %271 : vector<1x256xf32>
    %274 = arith.addf %269, %273 : vector<1x256xf32>
    %275 = arith.addf %260, %274 : vector<1x256xf32>
    %276 = vector.extract_strided_slice %117 {offsets = [0, 127], sizes = [2, 256], strides = [1, 1]} : vector<2x512xf32> to vector<2x256xf32>
    %cst_42 = arith.constant 0.000000e+00 : f32
    %277 = vector.shape_cast %22 : vector<1x256xi1> to vector<1x256xi1>
    %278 = vector.broadcast %277 : vector<1x256xi1> to vector<2x256xi1>
    %279 = vector.broadcast %cst_42 : f32 to vector<2x256xf32>
    %280 = arith.select %278, %276, %279 : vector<2x256xi1>, vector<2x256xf32>
    %c22 = arith.constant 22 : index
    %281 = memref.load %arg8[%c22] : memref<50xf32, #tpu.memory_space<smem>>
    %282 = vector.extract_strided_slice %280 {offsets = [0, 0], sizes = [1, 256], strides = [1, 1]} : vector<2x256xf32> to vector<1x256xf32>
    %283 = vector.broadcast %281 : f32 to vector<1x256xf32>
    %284 = arith.mulf %283, %282 : vector<1x256xf32>
    %c23 = arith.constant 23 : index
    %285 = memref.load %arg8[%c23] : memref<50xf32, #tpu.memory_space<smem>>
    %286 = vector.extract_strided_slice %280 {offsets = [1, 0], sizes = [1, 256], strides = [1, 1]} : vector<2x256xf32> to vector<1x256xf32>
    %287 = vector.broadcast %285 : f32 to vector<1x256xf32>
    %288 = arith.mulf %287, %286 : vector<1x256xf32>
    %289 = arith.addf %284, %288 : vector<1x256xf32>
    %290 = arith.addf %275, %289 : vector<1x256xf32>
    %291 = vector.extract_strided_slice %117 {offsets = [0, 128], sizes = [2, 256], strides = [1, 1]} : vector<2x512xf32> to vector<2x256xf32>
    %c24 = arith.constant 24 : index
    %292 = memref.load %arg8[%c24] : memref<50xf32, #tpu.memory_space<smem>>
    %293 = vector.extract_strided_slice %291 {offsets = [0, 0], sizes = [1, 256], strides = [1, 1]} : vector<2x256xf32> to vector<1x256xf32>
    %294 = vector.broadcast %292 : f32 to vector<1x256xf32>
    %295 = arith.mulf %294, %293 : vector<1x256xf32>
    %c25 = arith.constant 25 : index
    %296 = memref.load %arg8[%c25] : memref<50xf32, #tpu.memory_space<smem>>
    %297 = vector.extract_strided_slice %291 {offsets = [1, 0], sizes = [1, 256], strides = [1, 1]} : vector<2x256xf32> to vector<1x256xf32>
    %298 = vector.broadcast %296 : f32 to vector<1x256xf32>
    %299 = arith.mulf %298, %297 : vector<1x256xf32>
    %300 = arith.addf %295, %299 : vector<1x256xf32>
    %301 = arith.addf %290, %300 : vector<1x256xf32>
    %302 = vector.extract_strided_slice %117 {offsets = [0, 129], sizes = [2, 256], strides = [1, 1]} : vector<2x512xf32> to vector<2x256xf32>
    %cst_43 = arith.constant 0.000000e+00 : f32
    %303 = vector.shape_cast %24 : vector<1x256xi1> to vector<1x256xi1>
    %304 = vector.broadcast %303 : vector<1x256xi1> to vector<2x256xi1>
    %305 = vector.broadcast %cst_43 : f32 to vector<2x256xf32>
    %306 = arith.select %304, %302, %305 : vector<2x256xi1>, vector<2x256xf32>
    %c26 = arith.constant 26 : index
    %307 = memref.load %arg8[%c26] : memref<50xf32, #tpu.memory_space<smem>>
    %308 = vector.extract_strided_slice %306 {offsets = [0, 0], sizes = [1, 256], strides = [1, 1]} : vector<2x256xf32> to vector<1x256xf32>
    %309 = vector.broadcast %307 : f32 to vector<1x256xf32>
    %310 = arith.mulf %309, %308 : vector<1x256xf32>
    %c27 = arith.constant 27 : index
    %311 = memref.load %arg8[%c27] : memref<50xf32, #tpu.memory_space<smem>>
    %312 = vector.extract_strided_slice %306 {offsets = [1, 0], sizes = [1, 256], strides = [1, 1]} : vector<2x256xf32> to vector<1x256xf32>
    %313 = vector.broadcast %311 : f32 to vector<1x256xf32>
    %314 = arith.mulf %313, %312 : vector<1x256xf32>
    %315 = arith.addf %310, %314 : vector<1x256xf32>
    %316 = arith.addf %301, %315 : vector<1x256xf32>
    %317 = vector.extract_strided_slice %117 {offsets = [0, 130], sizes = [2, 256], strides = [1, 1]} : vector<2x512xf32> to vector<2x256xf32>
    %cst_44 = arith.constant 0.000000e+00 : f32
    %318 = vector.shape_cast %26 : vector<1x256xi1> to vector<1x256xi1>
    %319 = vector.broadcast %318 : vector<1x256xi1> to vector<2x256xi1>
    %320 = vector.broadcast %cst_44 : f32 to vector<2x256xf32>
    %321 = arith.select %319, %317, %320 : vector<2x256xi1>, vector<2x256xf32>
    %c28 = arith.constant 28 : index
    %322 = memref.load %arg8[%c28] : memref<50xf32, #tpu.memory_space<smem>>
    %323 = vector.extract_strided_slice %321 {offsets = [0, 0], sizes = [1, 256], strides = [1, 1]} : vector<2x256xf32> to vector<1x256xf32>
    %324 = vector.broadcast %322 : f32 to vector<1x256xf32>
    %325 = arith.mulf %324, %323 : vector<1x256xf32>
    %c29 = arith.constant 29 : index
    %326 = memref.load %arg8[%c29] : memref<50xf32, #tpu.memory_space<smem>>
    %327 = vector.extract_strided_slice %321 {offsets = [1, 0], sizes = [1, 256], strides = [1, 1]} : vector<2x256xf32> to vector<1x256xf32>
    %328 = vector.broadcast %326 : f32 to vector<1x256xf32>
    %329 = arith.mulf %328, %327 : vector<1x256xf32>
    %330 = arith.addf %325, %329 : vector<1x256xf32>
    %331 = arith.addf %316, %330 : vector<1x256xf32>
    %332 = vector.extract_strided_slice %117 {offsets = [0, 142], sizes = [2, 256], strides = [1, 1]} : vector<2x512xf32> to vector<2x256xf32>
    %cst_45 = arith.constant 0.000000e+00 : f32
    %333 = vector.shape_cast %20 : vector<1x256xi1> to vector<1x256xi1>
    %334 = vector.broadcast %333 : vector<1x256xi1> to vector<2x256xi1>
    %335 = vector.broadcast %cst_45 : f32 to vector<2x256xf32>
    %336 = arith.select %334, %332, %335 : vector<2x256xi1>, vector<2x256xf32>
    %c30 = arith.constant 30 : index
    %337 = memref.load %arg8[%c30] : memref<50xf32, #tpu.memory_space<smem>>
    %338 = vector.extract_strided_slice %336 {offsets = [0, 0], sizes = [1, 256], strides = [1, 1]} : vector<2x256xf32> to vector<1x256xf32>
    %339 = vector.broadcast %337 : f32 to vector<1x256xf32>
    %340 = arith.mulf %339, %338 : vector<1x256xf32>
    %c31 = arith.constant 31 : index
    %341 = memref.load %arg8[%c31] : memref<50xf32, #tpu.memory_space<smem>>
    %342 = vector.extract_strided_slice %336 {offsets = [1, 0], sizes = [1, 256], strides = [1, 1]} : vector<2x256xf32> to vector<1x256xf32>
    %343 = vector.broadcast %341 : f32 to vector<1x256xf32>
    %344 = arith.mulf %343, %342 : vector<1x256xf32>
    %345 = arith.addf %340, %344 : vector<1x256xf32>
    %346 = arith.addf %331, %345 : vector<1x256xf32>
    %347 = vector.extract_strided_slice %117 {offsets = [0, 143], sizes = [2, 256], strides = [1, 1]} : vector<2x512xf32> to vector<2x256xf32>
    %cst_46 = arith.constant 0.000000e+00 : f32
    %348 = vector.shape_cast %22 : vector<1x256xi1> to vector<1x256xi1>
    %349 = vector.broadcast %348 : vector<1x256xi1> to vector<2x256xi1>
    %350 = vector.broadcast %cst_46 : f32 to vector<2x256xf32>
    %351 = arith.select %349, %347, %350 : vector<2x256xi1>, vector<2x256xf32>
    %c32 = arith.constant 32 : index
    %352 = memref.load %arg8[%c32] : memref<50xf32, #tpu.memory_space<smem>>
    %353 = vector.extract_strided_slice %351 {offsets = [0, 0], sizes = [1, 256], strides = [1, 1]} : vector<2x256xf32> to vector<1x256xf32>
    %354 = vector.broadcast %352 : f32 to vector<1x256xf32>
    %355 = arith.mulf %354, %353 : vector<1x256xf32>
    %c33 = arith.constant 33 : index
    %356 = memref.load %arg8[%c33] : memref<50xf32, #tpu.memory_space<smem>>
    %357 = vector.extract_strided_slice %351 {offsets = [1, 0], sizes = [1, 256], strides = [1, 1]} : vector<2x256xf32> to vector<1x256xf32>
    %358 = vector.broadcast %356 : f32 to vector<1x256xf32>
    %359 = arith.mulf %358, %357 : vector<1x256xf32>
    %360 = arith.addf %355, %359 : vector<1x256xf32>
    %361 = arith.addf %346, %360 : vector<1x256xf32>
    %362 = vector.extract_strided_slice %117 {offsets = [0, 144], sizes = [2, 256], strides = [1, 1]} : vector<2x512xf32> to vector<2x256xf32>
    %c34 = arith.constant 34 : index
    %363 = memref.load %arg8[%c34] : memref<50xf32, #tpu.memory_space<smem>>
    %364 = vector.extract_strided_slice %362 {offsets = [0, 0], sizes = [1, 256], strides = [1, 1]} : vector<2x256xf32> to vector<1x256xf32>
    %365 = vector.broadcast %363 : f32 to vector<1x256xf32>
    %366 = arith.mulf %365, %364 : vector<1x256xf32>
    %c35 = arith.constant 35 : index
    %367 = memref.load %arg8[%c35] : memref<50xf32, #tpu.memory_space<smem>>
    %368 = vector.extract_strided_slice %362 {offsets = [1, 0], sizes = [1, 256], strides = [1, 1]} : vector<2x256xf32> to vector<1x256xf32>
    %369 = vector.broadcast %367 : f32 to vector<1x256xf32>
    %370 = arith.mulf %369, %368 : vector<1x256xf32>
    %371 = arith.addf %366, %370 : vector<1x256xf32>
    %372 = arith.addf %361, %371 : vector<1x256xf32>
    %373 = vector.extract_strided_slice %117 {offsets = [0, 145], sizes = [2, 256], strides = [1, 1]} : vector<2x512xf32> to vector<2x256xf32>
    %cst_47 = arith.constant 0.000000e+00 : f32
    %374 = vector.shape_cast %24 : vector<1x256xi1> to vector<1x256xi1>
    %375 = vector.broadcast %374 : vector<1x256xi1> to vector<2x256xi1>
    %376 = vector.broadcast %cst_47 : f32 to vector<2x256xf32>
    %377 = arith.select %375, %373, %376 : vector<2x256xi1>, vector<2x256xf32>
    %c36 = arith.constant 36 : index
    %378 = memref.load %arg8[%c36] : memref<50xf32, #tpu.memory_space<smem>>
    %379 = vector.extract_strided_slice %377 {offsets = [0, 0], sizes = [1, 256], strides = [1, 1]} : vector<2x256xf32> to vector<1x256xf32>
    %380 = vector.broadcast %378 : f32 to vector<1x256xf32>
    %381 = arith.mulf %380, %379 : vector<1x256xf32>
    %c37 = arith.constant 37 : index
    %382 = memref.load %arg8[%c37] : memref<50xf32, #tpu.memory_space<smem>>
    %383 = vector.extract_strided_slice %377 {offsets = [1, 0], sizes = [1, 256], strides = [1, 1]} : vector<2x256xf32> to vector<1x256xf32>
    %384 = vector.broadcast %382 : f32 to vector<1x256xf32>
    %385 = arith.mulf %384, %383 : vector<1x256xf32>
    %386 = arith.addf %381, %385 : vector<1x256xf32>
    %387 = arith.addf %372, %386 : vector<1x256xf32>
    %388 = vector.extract_strided_slice %117 {offsets = [0, 146], sizes = [2, 256], strides = [1, 1]} : vector<2x512xf32> to vector<2x256xf32>
    %cst_48 = arith.constant 0.000000e+00 : f32
    %389 = vector.shape_cast %26 : vector<1x256xi1> to vector<1x256xi1>
    %390 = vector.broadcast %389 : vector<1x256xi1> to vector<2x256xi1>
    %391 = vector.broadcast %cst_48 : f32 to vector<2x256xf32>
    %392 = arith.select %390, %388, %391 : vector<2x256xi1>, vector<2x256xf32>
    %c38 = arith.constant 38 : index
    %393 = memref.load %arg8[%c38] : memref<50xf32, #tpu.memory_space<smem>>
    %394 = vector.extract_strided_slice %392 {offsets = [0, 0], sizes = [1, 256], strides = [1, 1]} : vector<2x256xf32> to vector<1x256xf32>
    %395 = vector.broadcast %393 : f32 to vector<1x256xf32>
    %396 = arith.mulf %395, %394 : vector<1x256xf32>
    %c39 = arith.constant 39 : index
    %397 = memref.load %arg8[%c39] : memref<50xf32, #tpu.memory_space<smem>>
    %398 = vector.extract_strided_slice %392 {offsets = [1, 0], sizes = [1, 256], strides = [1, 1]} : vector<2x256xf32> to vector<1x256xf32>
    %399 = vector.broadcast %397 : f32 to vector<1x256xf32>
    %400 = arith.mulf %399, %398 : vector<1x256xf32>
    %401 = arith.addf %396, %400 : vector<1x256xf32>
    %402 = arith.addf %387, %401 : vector<1x256xf32>
    %403 = vector.extract_strided_slice %117 {offsets = [0, 158], sizes = [2, 256], strides = [1, 1]} : vector<2x512xf32> to vector<2x256xf32>
    %cst_49 = arith.constant 0.000000e+00 : f32
    %404 = vector.shape_cast %20 : vector<1x256xi1> to vector<1x256xi1>
    %405 = vector.broadcast %404 : vector<1x256xi1> to vector<2x256xi1>
    %406 = vector.broadcast %cst_49 : f32 to vector<2x256xf32>
    %407 = arith.select %405, %403, %406 : vector<2x256xi1>, vector<2x256xf32>
    %c40 = arith.constant 40 : index
    %408 = memref.load %arg8[%c40] : memref<50xf32, #tpu.memory_space<smem>>
    %409 = vector.extract_strided_slice %407 {offsets = [0, 0], sizes = [1, 256], strides = [1, 1]} : vector<2x256xf32> to vector<1x256xf32>
    %410 = vector.broadcast %408 : f32 to vector<1x256xf32>
    %411 = arith.mulf %410, %409 : vector<1x256xf32>
    %c41 = arith.constant 41 : index
    %412 = memref.load %arg8[%c41] : memref<50xf32, #tpu.memory_space<smem>>
    %413 = vector.extract_strided_slice %407 {offsets = [1, 0], sizes = [1, 256], strides = [1, 1]} : vector<2x256xf32> to vector<1x256xf32>
    %414 = vector.broadcast %412 : f32 to vector<1x256xf32>
    %415 = arith.mulf %414, %413 : vector<1x256xf32>
    %416 = arith.addf %411, %415 : vector<1x256xf32>
    %417 = arith.addf %402, %416 : vector<1x256xf32>
    %418 = vector.extract_strided_slice %117 {offsets = [0, 159], sizes = [2, 256], strides = [1, 1]} : vector<2x512xf32> to vector<2x256xf32>
    %cst_50 = arith.constant 0.000000e+00 : f32
    %419 = vector.shape_cast %22 : vector<1x256xi1> to vector<1x256xi1>
    %420 = vector.broadcast %419 : vector<1x256xi1> to vector<2x256xi1>
    %421 = vector.broadcast %cst_50 : f32 to vector<2x256xf32>
    %422 = arith.select %420, %418, %421 : vector<2x256xi1>, vector<2x256xf32>
    %c42 = arith.constant 42 : index
    %423 = memref.load %arg8[%c42] : memref<50xf32, #tpu.memory_space<smem>>
    %424 = vector.extract_strided_slice %422 {offsets = [0, 0], sizes = [1, 256], strides = [1, 1]} : vector<2x256xf32> to vector<1x256xf32>
    %425 = vector.broadcast %423 : f32 to vector<1x256xf32>
    %426 = arith.mulf %425, %424 : vector<1x256xf32>
    %c43 = arith.constant 43 : index
    %427 = memref.load %arg8[%c43] : memref<50xf32, #tpu.memory_space<smem>>
    %428 = vector.extract_strided_slice %422 {offsets = [1, 0], sizes = [1, 256], strides = [1, 1]} : vector<2x256xf32> to vector<1x256xf32>
    %429 = vector.broadcast %427 : f32 to vector<1x256xf32>
    %430 = arith.mulf %429, %428 : vector<1x256xf32>
    %431 = arith.addf %426, %430 : vector<1x256xf32>
    %432 = arith.addf %417, %431 : vector<1x256xf32>
    %433 = vector.extract_strided_slice %117 {offsets = [0, 160], sizes = [2, 256], strides = [1, 1]} : vector<2x512xf32> to vector<2x256xf32>
    %c44 = arith.constant 44 : index
    %434 = memref.load %arg8[%c44] : memref<50xf32, #tpu.memory_space<smem>>
    %435 = vector.extract_strided_slice %433 {offsets = [0, 0], sizes = [1, 256], strides = [1, 1]} : vector<2x256xf32> to vector<1x256xf32>
    %436 = vector.broadcast %434 : f32 to vector<1x256xf32>
    %437 = arith.mulf %436, %435 : vector<1x256xf32>
    %c45 = arith.constant 45 : index
    %438 = memref.load %arg8[%c45] : memref<50xf32, #tpu.memory_space<smem>>
    %439 = vector.extract_strided_slice %433 {offsets = [1, 0], sizes = [1, 256], strides = [1, 1]} : vector<2x256xf32> to vector<1x256xf32>
    %440 = vector.broadcast %438 : f32 to vector<1x256xf32>
    %441 = arith.mulf %440, %439 : vector<1x256xf32>
    %442 = arith.addf %437, %441 : vector<1x256xf32>
    %443 = arith.addf %432, %442 : vector<1x256xf32>
    %444 = vector.extract_strided_slice %117 {offsets = [0, 161], sizes = [2, 256], strides = [1, 1]} : vector<2x512xf32> to vector<2x256xf32>
    %cst_51 = arith.constant 0.000000e+00 : f32
    %445 = vector.shape_cast %24 : vector<1x256xi1> to vector<1x256xi1>
    %446 = vector.broadcast %445 : vector<1x256xi1> to vector<2x256xi1>
    %447 = vector.broadcast %cst_51 : f32 to vector<2x256xf32>
    %448 = arith.select %446, %444, %447 : vector<2x256xi1>, vector<2x256xf32>
    %c46 = arith.constant 46 : index
    %449 = memref.load %arg8[%c46] : memref<50xf32, #tpu.memory_space<smem>>
    %450 = vector.extract_strided_slice %448 {offsets = [0, 0], sizes = [1, 256], strides = [1, 1]} : vector<2x256xf32> to vector<1x256xf32>
    %451 = vector.broadcast %449 : f32 to vector<1x256xf32>
    %452 = arith.mulf %451, %450 : vector<1x256xf32>
    %c47 = arith.constant 47 : index
    %453 = memref.load %arg8[%c47] : memref<50xf32, #tpu.memory_space<smem>>
    %454 = vector.extract_strided_slice %448 {offsets = [1, 0], sizes = [1, 256], strides = [1, 1]} : vector<2x256xf32> to vector<1x256xf32>
    %455 = vector.broadcast %453 : f32 to vector<1x256xf32>
    %456 = arith.mulf %455, %454 : vector<1x256xf32>
    %457 = arith.addf %452, %456 : vector<1x256xf32>
    %458 = arith.addf %443, %457 : vector<1x256xf32>
    %459 = vector.extract_strided_slice %117 {offsets = [0, 162], sizes = [2, 256], strides = [1, 1]} : vector<2x512xf32> to vector<2x256xf32>
    %cst_52 = arith.constant 0.000000e+00 : f32
    %460 = vector.shape_cast %26 : vector<1x256xi1> to vector<1x256xi1>
    %461 = vector.broadcast %460 : vector<1x256xi1> to vector<2x256xi1>
    %462 = vector.broadcast %cst_52 : f32 to vector<2x256xf32>
    %463 = arith.select %461, %459, %462 : vector<2x256xi1>, vector<2x256xf32>
    %c48 = arith.constant 48 : index
    %464 = memref.load %arg8[%c48] : memref<50xf32, #tpu.memory_space<smem>>
    %465 = vector.extract_strided_slice %463 {offsets = [0, 0], sizes = [1, 256], strides = [1, 1]} : vector<2x256xf32> to vector<1x256xf32>
    %466 = vector.broadcast %464 : f32 to vector<1x256xf32>
    %467 = arith.mulf %466, %465 : vector<1x256xf32>
    %c49 = arith.constant 49 : index
    %468 = memref.load %arg8[%c49] : memref<50xf32, #tpu.memory_space<smem>>
    %469 = vector.extract_strided_slice %463 {offsets = [1, 0], sizes = [1, 256], strides = [1, 1]} : vector<2x256xf32> to vector<1x256xf32>
    %470 = vector.broadcast %468 : f32 to vector<1x256xf32>
    %471 = arith.mulf %470, %469 : vector<1x256xf32>
    %472 = arith.addf %467, %471 : vector<1x256xf32>
    %473 = arith.addf %458, %472 : vector<1x256xf32>
    %474 = arith.negf %473 : vector<1x256xf32>
    %475 = math.exp %474 : vector<1x256xf32>
    %cst_53 = arith.constant 1.000000e+00 : f32
    %476 = vector.broadcast %cst_53 : f32 to vector<1x256xf32>
    %477 = arith.addf %476, %475 : vector<1x256xf32>
    %478 = arith.divf %476, %477 : vector<1x256xf32>
    %479 = vector.broadcast %478 : vector<1x256xf32> to vector<16x256xf32>
    %480 = arith.mulf %108, %479 : vector<16x256xf32>
    %cst_54 = arith.constant dense<0.000000e+00> : vector<16xf32>
    %481 = vector.multi_reduction <add>, %108, %cst_54 [1] : vector<16x256xf32> to vector<16xf32>
    %482 = vector.shape_cast %481 : vector<16xf32> to vector<16x1xf32>
    %cst_55 = arith.constant 2.560000e+02 : f32
    %483 = vector.broadcast %cst_55 : f32 to vector<16x1xf32>
    %484 = arith.divf %482, %483 : vector<16x1xf32>
    %c0_56 = arith.constant 0 : index
    %c0_57 = arith.constant 0 : index
    %485 = vector.load %arg4[%c0_56, %c0_57] : memref<16x2xf32, #tpu.memory_space<vmem>>, vector<16x2xf32>
    %486 = vector.broadcast %484 : vector<16x1xf32> to vector<16x2xf32>
    %487 = arith.mulf %485, %486 : vector<16x2xf32>
    %cst_58 = arith.constant dense<0.000000e+00> : vector<2xf32>
    %488 = vector.multi_reduction <add>, %487, %cst_58 [0] : vector<16x2xf32> to vector<2xf32>
    %489 = vector.shape_cast %488 : vector<2xf32> to vector<1x2xf32>
    %cst_59 = arith.constant 0.000000e+00 : f32
    %490 = vector.broadcast %cst_59 : f32 to vector<1x2xf32>
    %491 = arith.maximumf %489, %490 : vector<1x2xf32>
    %c0_60 = arith.constant 0 : index
    %c0_61 = arith.constant 0 : index
    %492 = vector.load %arg5[%c0_60, %c0_61] : memref<16x2xf32, #tpu.memory_space<vmem>>, vector<16x2xf32>
    %493 = vector.broadcast %491 : vector<1x2xf32> to vector<16x2xf32>
    %494 = arith.mulf %492, %493 : vector<16x2xf32>
    %cst_62 = arith.constant dense<0.000000e+00> : vector<16xf32>
    %495 = vector.multi_reduction <add>, %494, %cst_62 [1] : vector<16x2xf32> to vector<16xf32>
    %496 = vector.shape_cast %495 : vector<16xf32> to vector<16x1xf32>
    %497 = arith.negf %496 : vector<16x1xf32>
    %498 = math.exp %497 : vector<16x1xf32>
    %cst_63 = arith.constant 1.000000e+00 : f32
    %499 = vector.broadcast %cst_63 : f32 to vector<16x1xf32>
    %500 = arith.addf %499, %498 : vector<16x1xf32>
    %501 = arith.divf %499, %500 : vector<16x1xf32>
    %502 = vector.broadcast %501 : vector<16x1xf32> to vector<16x256xf32>
    %503 = arith.mulf %108, %502 : vector<16x256xf32>
    %504 = tpu.concatenate %480, %503 in 0 : vector<16x256xf32>, vector<16x256xf32> -> vector<32x256xf32>
    %c0_64 = arith.constant 0 : index
    %c0_65 = arith.constant 0 : index
    %505 = vector.load %arg6[%c0_64, %c0_65] : memref<16x32xf32, #tpu.memory_space<vmem>>, vector<16x32xf32>
    %cst_66 = arith.constant dense<0.000000e+00> : vector<16x256xf32>
    %506 = tpu.matmul %505, %504, %cst_66 {dimension_numbers = #tpu.dot_dimension_numbers<[1], [0], [0], [1], [0, 0, 1, 1], [], []>} : vector<16x32xf32>, vector<32x256xf32>, vector<16x256xf32> -> vector<16x256xf32>
    %507 = arith.addf %506, %1 : vector<16x256xf32>
    %c0_67 = arith.constant 0 : index
    %c0_68 = arith.constant 0 : index
    %c0_69 = arith.constant 0 : index
    %508 = vector.load %arg9[%c0_67, %c0_68, %c0_69] : memref<1x16x256xf32, #tpu.memory_space<vmem>>, vector<1x16x256xf32>
    %509 = vector.shape_cast %508 : vector<1x16x256xf32> to vector<16x256xf32>
    %510 = vector.shape_cast %507 : vector<16x256xf32> to vector<1x16x256xf32>
    tpu.vector_store %arg9[%c0_67, %c0_68, %c0_69], %510 {strides = array<i32>} : memref<1x16x256xf32, #tpu.memory_space<vmem>>, vector<1x16x256xf32>,
    return
  }
  func.func @transform_0(%arg0: i32) -> (i32, i32, i32) {
    %c0_i32 = arith.constant 0 : i32
    %c0_i32_0 = arith.constant 0 : i32
    %c0_i32_1 = arith.constant 0 : i32
    return %arg0, %c0_i32, %c0_i32_0 : i32, i32, i32
  }
  func.func @transform_1(%arg0: i32) -> (i32, i32) {
    %c0_i32 = arith.constant 0 : i32
    %c0_i32_0 = arith.constant 0 : i32
    %c0_i32_1 = arith.constant 0 : i32
    return %c0_i32, %c0_i32_0 : i32, i32
  }
  func.func @transform_2(%arg0: i32) -> (i32, i32) {
    %c0_i32 = arith.constant 0 : i32
    %c0_i32_0 = arith.constant 0 : i32
    %c0_i32_1 = arith.constant 0 : i32
    return %c0_i32, %c0_i32_0 : i32, i32
  }
  func.func @transform_3(%arg0: i32) -> (i32, i32) {
    %c0_i32 = arith.constant 0 : i32
    %c0_i32_0 = arith.constant 0 : i32
    %c0_i32_1 = arith.constant 0 : i32
    return %c0_i32, %c0_i32_0 : i32, i32
  }
  func.func @transform_4(%arg0: i32) -> (i32, i32) {
    %c0_i32 = arith.constant 0 : i32
    %c0_i32_0 = arith.constant 0 : i32
    %c0_i32_1 = arith.constant 0 : i32
    return %c0_i32, %c0_i32_0 : i32, i32
  }
  func.func @transform_5(%arg0: i32) -> (i32, i32) {
    %c0_i32 = arith.constant 0 : i32
    %c0_i32_0 = arith.constant 0 : i32
    %c0_i32_1 = arith.constant 0 : i32
    return %c0_i32, %c0_i32_0 : i32, i32
  }
  func.func @transform_6(%arg0: i32) -> i32 {
    %c0_i32 = arith.constant 0 : i32
    %c0_i32_0 = arith.constant 0 : i32
    return %c0_i32 : i32
  }
  func.func @transform_7(%arg0: i32) -> i32 {
    %c0_i32 = arith.constant 0 : i32
    %c0_i32_0 = arith.constant 0 : i32
    return %c0_i32 : i32
  }
  func.func @transform_8(%arg0: i32) -> (i32, i32, i32) {
    %c0_i32 = arith.constant 0 : i32
    %c0_i32_0 = arith.constant 0 : i32
    %c0_i32_1 = arith.constant 0 : i32
    return %arg0, %c0_i32, %c0_i32_0 : i32, i32, i32
  }
}

</mosaic_0001>

<llo_original>
// kernel: tpu_custom_call.1
$region0: #{tpu_custom_call.1}
  #allocation0 [shape = 'u32[]', space=smem, size = 0x4, offset = 0x4, fixed_abs, tag = 'smem constant byte address 0x4 - core index']
  #allocation1 [shape = 'u32[72,128]{1,0:T(1,128)}', space=vmem, size = 0x9000, scoped, tag = 'internal scratch']
  #allocation2 [shape = 'f32[1]{0:T(128)S(6)}', space=smem, size = 0x200, scoped, tag = 'scoped memory for tpu_custom_call.1']
  %s0 = inlined_call_operand.hbm [shape: f32[2,16,256], index: 0, kind: input, shape index: {}]
  %s1 = inlined_call_operand.vmem [shape: f32[16,144], index: 1, kind: input, shape index: {}]
  %s2 = inlined_call_operand.hbm [shape: f32[16,144], index: 2, kind: input, shape index: {}]
  %s3 = inlined_call_operand.vmem [shape: f32[16,2], index: 3, kind: input, shape index: {}]
  %s4 = inlined_call_operand.vmem [shape: f32[16,2], index: 4, kind: input, shape index: {}]
  %s5 = inlined_call_operand.hbm [shape: f32[16,32], index: 5, kind: input, shape index: {}]
  %s6 = inlined_call_operand.<no memory space> [shape: f32[1], index: 6, kind: input, shape index: {}]
  %s7 = inlined_call_operand.vmem [shape: f32[50], index: 7, kind: input, shape index: {}]
  %s8 = inlined_call_operand.hbm [shape: f32[2,16,256], index: 8, kind: output, shape index: {}]
  %s9 = sld [smem:[#allocation0]]
  $region81: #{tpu_custom_call.1} parent=0
    _
  %s11 = ssub.s32 1, %s9
  %s12 = scalar_select 0, %s11, %s9
  %13 = sst [smem:[#allocation2]] %s6
  $region1: #{tpu_custom_call.1} parent=0
    #allocation3 [shape = 'u8[32768]{0}', space=vmem, size = 0x8000, scoped, tag = 'input window, operand 0']
    #allocation4 [shape = 's32[2]{0}', space=sflag, size = 0x8, scoped, tag = 'scoped memory for tpu_custom_call.1']
    #allocation5 [shape = 's32[2]{0}', space=sflag, size = 0x8, scoped, tag = 'scoped memory for tpu_custom_call.1']
    #allocation6 [shape = 's32[2]{0}', space=sflag, size = 0x8, scoped, tag = 'scoped memory for tpu_custom_call.1']
    #allocation7 [shape = 'u8[16384]{0}', space=vmem, size = 0x4000, scoped, tag = 'input window, operand 2, single buffered']
    #allocation8 [shape = 's32[1]{0}', space=sflag, size = 0x4, scoped, tag = 'scoped memory for tpu_custom_call.1']
    #allocation9 [shape = 'u8[8192]{0}', space=vmem, size = 0x2000, scoped, tag = 'input window, operand 5, single buffered']
    #allocation10 [shape = 'u8[512]{0}', space=smem, size = 0x200, scoped, tag = 'input window, operand 7, single buffered']
    #allocation11 [shape = 'u8[32768]{0}', space=vmem, size = 0x8000, scoped, tag = 'output window, operand 0']
    %14 = vsyncpa [#allocation4], 0
    %s15 = scalar_lea.sflag [#allocation4], 1
    %16 = vsyncpa %s15, 0
    %17 = vsyncpa [#allocation8], 0
    %18 = vsyncpa [#allocation6], 0
    %19 = vsyncpa [#allocation5], 0
    %s20 = scalar_lea.sflag [#allocation5], 1
    %21 = vsyncpa %s20, 0
    loop: start=0, step=1, limit=4
    $region2: #{tpu_custom_call.1} parent=1 // loop_pre_header
      _
    $region3: #{tpu_custom_call.1} parent=1 // loop_header
      %s23 = sphi 0, %s27
      %p24 = scmp.ge.s32.totalorder %s23, 4
      %s33 = sphi 0, %s35
      %s36 = sphi 0, %s33
      %s37 = sphi 0, %s36
      %s53 = sphi 0, %s37
      %s57 = sphi 0, %s57
      %s59 = sphi 0, %s57
      %s60 = sphi 0, %s59
      %s74 = sphi 0, %s60
      %s78 = sphi 0, %s78
      %s80 = sphi 0, %s78
      %s81 = sphi 0, %s80
      %s95 = sphi 0, %s81
      %s99 = sphi 0, %s99
      %s101 = sphi 0, %s99
      %s102 = sphi 0, %s101
      %s116 = sphi 0, %s102
      %s120 = sphi 0, %s120
      %s122 = sphi 0, %s120
      %s123 = sphi 0, %s122
      %s137 = sphi 0, %s123
      %s141 = sphi 0, %s141
      %s143 = sphi 0, %s141
      %s144 = sphi 0, %s143
      %s158 = sphi 0, %s144
      %s162 = sphi 0, %s162
      %s164 = sphi 0, %s162
      %s165 = sphi 0, %s164
      %s179 = sphi 0, %s165
      %s183 = sphi 0, %s183
      %s185 = sphi 0, %s183
      %s186 = sphi 0, %s185
      %s200 = sphi 0, %s186
      %s206 = sphi 0, %s208
      %s209 = sphi 0, %s206
      %s210 = sphi 0, %s209
      %s226 = sphi 0, %s210
    $region4: #{tpu_custom_call.1} parent=1 // loop_header_branch
      %26 = sbr.rel (%p24) target = $region8
    $region5: #{tpu_custom_call.1} parent=1 // loop_body
      %s28 = ssub.s32 %s23, 1
      %s29 = ssub.s32 %s23, 2
      %s30 = sadd.s32 %s23, 1
      %s31 = ssub.s32 %s23, %s30
      %p32 = scmp.eq.s32.totalorder %s31, 0
      %s34 = sadd.s32 %s33, 1
      %s35 = scalar_select %p32, %s33, %s34
      %p38 = pneg %p32
      %p39 = scmp.eq.s32.totalorder %s23, 1
      %p40 = por %p38, %p39
      %p41 = scmp.ne.s32.totalorder %s33, %s36
      %p42 = scmp.eq.s32.totalorder %s23, 0
      %p43 = por %p41, %p42
      %p44 = scmp.ne.s32.totalorder %s33, %s36
      %p45 = scmp.eq.s32.totalorder %s28, 1
      %p46 = por %p44, %p45
      %p47 = scmp.ne.s32.totalorder %s36, %s37
      %p48 = scmp.eq.s32.totalorder %s28, 0
      %p49 = por %p47, %p48
      %p50 = scmp.ne.s32.totalorder %s36, %s37
      %p51 = scmp.eq.s32.totalorder %s29, 1
      %p52 = por %p50, %p51
      %p54 = scmp.ne.s32.totalorder %s37, %s53
      %p55 = scmp.eq.s32.totalorder %s29, 0
      %p56 = por %p54, %p55
      %s58 = sadd.s32 %s57, 1
      %p61 = scmp.eq.s32.totalorder %s23, 1
      %p62 = scmp.ne.s32.totalorder %s57, %s59
      %p63 = scmp.eq.s32.totalorder %s23, 0
      %p64 = por %p62, %p63
      %p65 = scmp.ne.s32.totalorder %s57, %s59
      %p66 = scmp.eq.s32.totalorder %s28, 1
      %p67 = por %p65, %p66
      %p68 = scmp.ne.s32.totalorder %s59, %s60
      %p69 = scmp.eq.s32.totalorder %s28, 0
      %p70 = por %p68, %p69
      %p71 = scmp.ne.s32.totalorder %s59, %s60
      %p72 = scmp.eq.s32.totalorder %s29, 1
      %p73 = por %p71, %p72
      %p75 = scmp.ne.s32.totalorder %s60, %s74
      %p76 = scmp.eq.s32.totalorder %s29, 0
      %p77 = por %p75, %p76
      %s79 = sadd.s32 %s78, 1
      %p82 = scmp.eq.s32.totalorder %s23, 1
      %p83 = scmp.ne.s32.totalorder %s78, %s80
      %p84 = scmp.eq.s32.totalorder %s23, 0
      %p85 = por %p83, %p84
      %p86 = scmp.ne.s32.totalorder %s78, %s80
      %p87 = scmp.eq.s32.totalorder %s28, 1
      %p88 = por %p86, %p87
      %p89 = scmp.ne.s32.totalorder %s80, %s81
      %p90 = scmp.eq.s32.totalorder %s28, 0
      %p91 = por %p89, %p90
      %p92 = scmp.ne.s32.totalorder %s80, %s81
      %p93 = scmp.eq.s32.totalorder %s29, 1
      %p94 = por %p92, %p93
      %p96 = scmp.ne.s32.totalorder %s81, %s95
      %p97 = scmp.eq.s32.totalorder %s29, 0
      %p98 = por %p96, %p97
      %s100 = sadd.s32 %s99, 1
      %p103 = scmp.eq.s32.totalorder %s23, 1
      %p104 = scmp.ne.s32.totalorder %s99, %s101
      %p105 = scmp.eq.s32.totalorder %s23, 0
      %p106 = por %p104, %p105
      %p107 = scmp.ne.s32.totalorder %s99, %s101
      %p108 = scmp.eq.s32.totalorder %s28, 1
      %p109 = por %p107, %p108
      %p110 = scmp.ne.s32.totalorder %s101, %s102
      %p111 = scmp.eq.s32.totalorder %s28, 0
      %p112 = por %p110, %p111
      %p113 = scmp.ne.s32.totalorder %s101, %s102
      %p114 = scmp.eq.s32.totalorder %s29, 1
      %p115 = por %p113, %p114
      %p117 = scmp.ne.s32.totalorder %s102, %s116
      %p118 = scmp.eq.s32.totalorder %s29, 0
      %p119 = por %p117, %p118
      %s121 = sadd.s32 %s120, 1
      %p124 = scmp.eq.s32.totalorder %s23, 1
      %p125 = scmp.ne.s32.totalorder %s120, %s122
      %p126 = scmp.eq.s32.totalorder %s23, 0
      %p127 = por %p125, %p126
      %p128 = scmp.ne.s32.totalorder %s120, %s122
      %p129 = scmp.eq.s32.totalorder %s28, 1
      %p130 = por %p128, %p129
      %p131 = scmp.ne.s32.totalorder %s122, %s123
      %p132 = scmp.eq.s32.totalorder %s28, 0
      %p133 = por %p131, %p132
      %p134 = scmp.ne.s32.totalorder %s122, %s123
      %p135 = scmp.eq.s32.totalorder %s29, 1
      %p136 = por %p134, %p135
      %p138 = scmp.ne.s32.totalorder %s123, %s137
      %p139 = scmp.eq.s32.totalorder %s29, 0
      %p140 = por %p138, %p139
      %s142 = sadd.s32 %s141, 1
      %p145 = scmp.eq.s32.totalorder %s23, 1
      %p146 = scmp.ne.s32.totalorder %s141, %s143
      %p147 = scmp.eq.s32.totalorder %s23, 0
      %p148 = por %p146, %p147
      %p149 = scmp.ne.s32.totalorder %s141, %s143
      %p150 = scmp.eq.s32.totalorder %s28, 1
      %p151 = por %p149, %p150
      %p152 = scmp.ne.s32.totalorder %s143, %s144
      %p153 = scmp.eq.s32.totalorder %s28, 0
      %p154 = por %p152, %p153
      %p155 = scmp.ne.s32.totalorder %s143, %s144
      %p156 = scmp.eq.s32.totalorder %s29, 1
      %p157 = por %p155, %p156
      %p159 = scmp.ne.s32.totalorder %s144, %s158
      %p160 = scmp.eq.s32.totalorder %s29, 0
      %p161 = por %p159, %p160
      %s163 = sadd.s32 %s162, 1
      %p166 = scmp.eq.s32.totalorder %s23, 1
      %p167 = scmp.ne.s32.totalorder %s162, %s164
      %p168 = scmp.eq.s32.totalorder %s23, 0
      %p169 = por %p167, %p168
      %p170 = scmp.ne.s32.totalorder %s162, %s164
      %p171 = scmp.eq.s32.totalorder %s28, 1
      %p172 = por %p170, %p171
      %p173 = scmp.ne.s32.totalorder %s164, %s165
      %p174 = scmp.eq.s32.totalorder %s28, 0
      %p175 = por %p173, %p174
      %p176 = scmp.ne.s32.totalorder %s164, %s165
      %p177 = scmp.eq.s32.totalorder %s29, 1
      %p178 = por %p176, %p177
      %p180 = scmp.ne.s32.totalorder %s165, %s179
      %p181 = scmp.eq.s32.totalorder %s29, 0
      %p182 = por %p180, %p181
      %s184 = sadd.s32 %s183, 1
      %p187 = scmp.eq.s32.totalorder %s23, 1
      %p188 = scmp.ne.s32.totalorder %s183, %s185
      %p189 = scmp.eq.s32.totalorder %s23, 0
      %p190 = por %p188, %p189
      %p191 = scmp.ne.s32.totalorder %s183, %s185
      %p192 = scmp.eq.s32.totalorder %s28, 1
      %p193 = por %p191, %p192
      %p194 = scmp.ne.s32.totalorder %s185, %s186
      %p195 = scmp.eq.s32.totalorder %s28, 0
      %p196 = por %p194, %p195
      %p197 = scmp.ne.s32.totalorder %s185, %s186
      %p198 = scmp.eq.s32.totalorder %s29, 1
      %p199 = por %p197, %p198
      %p201 = scmp.ne.s32.totalorder %s186, %s200
      %p202 = scmp.eq.s32.totalorder %s29, 0
      %p203 = por %p201, %p202
      %s204 = ssub.s32 %s23, %s30
      %p205 = scmp.eq.s32.totalorder %s204, 0
      %s207 = sadd.s32 %s206, 1
      %s208 = scalar_select %p205, %s206, %s207
      %p211 = pneg %p205
      %p212 = scmp.eq.s32.totalorder %s23, 1
      %p213 = por %p211, %p212
      %p214 = scmp.ne.s32.totalorder %s206, %s209
      %p215 = scmp.eq.s32.totalorder %s23, 0
      %p216 = por %p214, %p215
      %p217 = scmp.ne.s32.totalorder %s206, %s209
      %p218 = scmp.eq.s32.totalorder %s28, 1
      %p219 = por %p217, %p218
      %p220 = scmp.ne.s32.totalorder %s209, %s210
      %p221 = scmp.eq.s32.totalorder %s28, 0
      %p222 = por %p220, %p221
      %p223 = scmp.ne.s32.totalorder %s209, %s210
      %p224 = scmp.eq.s32.totalorder %s29, 1
      %p225 = por %p223, %p224
      %p227 = scmp.ne.s32.totalorder %s210, %s226
      %p228 = scmp.eq.s32.totalorder %s29, 0
      %p229 = por %p227, %p228
      %p230 = scmp.le.s32.totalorder 1, %s23
      %p231 = scmp.lt.s32.totalorder %s23, 3
      %p232 = pnand %p230, %p231
      %p233 = pneg %p232
      // Predicated region
      $region9: #{tpu_custom_call.1} parent=5 // pred_check
        _
      $region10: #{tpu_custom_call.1} parent=5 // pred_check_branch
        %235 = sbr.rel (%p232) target = $region12
      $region11: #{tpu_custom_call.1} parent=5 // pred_region
        %s236 = ssub.s32 %s23, 1
        // Predicated region
        $region13: #{tpu_custom_call.1} parent=11 // pred_check
          %p237 = pneg %p70
        $region14: #{tpu_custom_call.1} parent=11 // pred_check_branch
          %239 = sbr.rel (%p237) target = $region16
        $region15: #{tpu_custom_call.1} parent=11 // pred_region
          _
        $region16: #{tpu_custom_call.1} parent=11 // pred_fallthru
          _
        // Predicated region
        $region17: #{tpu_custom_call.1} parent=11 // pred_check
          %p240 = pneg %p91
        $region18: #{tpu_custom_call.1} parent=11 // pred_check_branch
          %242 = sbr.rel (%p240) target = $region20
        $region19: #{tpu_custom_call.1} parent=11 // pred_region
          %244 = vsyncadd [#allocation8], 0
          %s245 = sshll.u32 %s2, 4
          %s246 = int_to_ptr.hbm [resolvable:$true] %s245
          %s247 = sshll.u32 [#allocation7], 4
          %s248 = int_to_ptr.vmem [resolvable:$true] %s247
          %253 = dma.hbm_to_vmem [thread:$0]  %s246, 512, %s248, [#allocation8], 256, 256, 16
        $region20: #{tpu_custom_call.1} parent=11 // pred_fallthru
          _
        // Predicated region
        $region21: #{tpu_custom_call.1} parent=11 // pred_check
          %p254 = pneg %p112
        $region22: #{tpu_custom_call.1} parent=11 // pred_check_branch
          %256 = sbr.rel (%p254) target = $region24
        $region23: #{tpu_custom_call.1} parent=11 // pred_region
          _
        $region24: #{tpu_custom_call.1} parent=11 // pred_fallthru
          _
        // Predicated region
        $region25: #{tpu_custom_call.1} parent=11 // pred_check
          %p257 = pneg %p133
        $region26: #{tpu_custom_call.1} parent=11 // pred_check_branch
          %259 = sbr.rel (%p257) target = $region28
        $region27: #{tpu_custom_call.1} parent=11 // pred_region
          _
        $region28: #{tpu_custom_call.1} parent=11 // pred_fallthru
          _
        // Predicated region
        $region29: #{tpu_custom_call.1} parent=11 // pred_check
          %p260 = pneg %p154
        $region30: #{tpu_custom_call.1} parent=11 // pred_check_branch
          %262 = sbr.rel (%p260) target = $region32
        $region31: #{tpu_custom_call.1} parent=11 // pred_region
          %264 = vsyncadd [#allocation8], 0
          %s265 = sshll.u32 %s5, 4
          %s266 = int_to_ptr.hbm [resolvable:$true] %s265
          %s267 = sshll.u32 [#allocation9], 4
          %s268 = int_to_ptr.vmem [resolvable:$true] %s267
          %273 = dma.hbm_to_vmem [thread:$0]  %s266, 256, %s268, [#allocation8], 128, 128, 8
        $region32: #{tpu_custom_call.1} parent=11 // pred_fallthru
          _
        // Predicated region
        $region33: #{tpu_custom_call.1} parent=11 // pred_check
          %p274 = pneg %p175
        $region34: #{tpu_custom_call.1} parent=11 // pred_check_branch
          %276 = sbr.rel (%p274) target = $region36
        $region35: #{tpu_custom_call.1} parent=11 // pred_region
          _
        $region36: #{tpu_custom_call.1} parent=11 // pred_fallthru
          _
        // Predicated region
        $region37: #{tpu_custom_call.1} parent=11 // pred_check
          %p277 = pneg %p196
        $region38: #{tpu_custom_call.1} parent=11 // pred_check_branch
          %279 = sbr.rel (%p277) target = $region40
        $region39: #{tpu_custom_call.1} parent=11 // pred_region
          %281 = vsyncadd [#allocation6], 0
          %s283 = sshll.u32 %s7, 4
          %s284 = int_to_ptr.vmem [resolvable:$true] %s283
          %286 = dma.vmem_to_smem %s284, 16, [#allocation10], [#allocation6]
        $region40: #{tpu_custom_call.1} parent=11 // pred_fallthru
          _
      $region12: #{tpu_custom_call.1} parent=5 // pred_fallthru
        _
      %p287 = scmp.lt.s32.totalorder %s23, 2
      // Predicated region
      $region41: #{tpu_custom_call.1} parent=5 // pred_check
        %p288 = pneg %p287
      $region42: #{tpu_custom_call.1} parent=5 // pred_check_branch
        %290 = sbr.rel (%p288) target = $region44
      $region43: #{tpu_custom_call.1} parent=5 // pred_region
        // Predicated region
        $region45: #{tpu_custom_call.1} parent=43 // pred_check
          %p291 = pneg %p43
        $region46: #{tpu_custom_call.1} parent=43 // pred_check_branch
          %293 = sbr.rel (%p291) target = $region48
        $region47: #{tpu_custom_call.1} parent=43 // pred_region
          %s294 = sand.u32 %s33, 1
          %s295 = scalar_lea.sflag [#allocation4], %s294
          %s296 = sand.u32 %s33, 1
          %s297 = smul.addr %s296, 32
          %s298 = scalar_lea.vmem [#allocation3], %s297
          %300 = vsyncadd %s295, 0
          %s301 = smul.addr %s23, 4
          %s302 = smul.addr %s301, 8
          %s303 = scalar_lea.hbm %s0, %s302
          %s304 = sshll.u32 %s303, 4
          %s305 = int_to_ptr.hbm [resolvable:$true] %s304
          %s306 = sshll.u32 %s298, 4
          %s307 = int_to_ptr.vmem [resolvable:$true] %s306
          %312 = dma.hbm_to_vmem [thread:$0]  %s305, 512, %s307, %s295, 256, 256, 16
        $region48: #{tpu_custom_call.1} parent=43 // pred_fallthru
          _
      $region44: #{tpu_custom_call.1} parent=5 // pred_fallthru
        _
      %p313 = scmp.le.s32.totalorder 1, %s23
      %p314 = scmp.lt.s32.totalorder %s23, 3
      %p315 = pnand %p313, %p314
      %p316 = pneg %p315
      // Predicated region
      $region49: #{tpu_custom_call.1} parent=5 // pred_check
        _
      $region50: #{tpu_custom_call.1} parent=5 // pred_check_branch
        %318 = sbr.rel (%p315) target = $region52
      $region51: #{tpu_custom_call.1} parent=5 // pred_region
        %s319 = ssub.s32 %s23, 1
        %s320 = sand.u32 %s36, 1
        %s321 = scalar_lea.sflag [#allocation4], %s320
        %s322 = sand.u32 %s36, 1
        %s323 = smul.addr %s322, 32
        %s324 = scalar_lea.vmem [#allocation3], %s323
        // Predicated region
        $region53: #{tpu_custom_call.1} parent=51 // pred_check
          %p325 = pneg %p49
        $region54: #{tpu_custom_call.1} parent=51 // pred_check_branch
          %327 = sbr.rel (%p325) target = $region56
        $region55: #{tpu_custom_call.1} parent=51 // pred_region
          %329 = dma.done %s321, 512
        $region56: #{tpu_custom_call.1} parent=51 // pred_fallthru
          _
        // Predicated region
        $region57: #{tpu_custom_call.1} parent=51 // pred_check
          %p330 = pneg %p91
        $region58: #{tpu_custom_call.1} parent=51 // pred_check_branch
          %332 = sbr.rel (%p330) target = $region60
        $region59: #{tpu_custom_call.1} parent=51 // pred_region
          %334 = dma.done [#allocation8], 512
        $region60: #{tpu_custom_call.1} parent=51 // pred_fallthru
          _
        // Predicated region
        $region61: #{tpu_custom_call.1} parent=51 // pred_check
          %p335 = pneg %p154
        $region62: #{tpu_custom_call.1} parent=51 // pred_check_branch
          %337 = sbr.rel (%p335) target = $region64
        $region63: #{tpu_custom_call.1} parent=51 // pred_region
          %339 = dma.done [#allocation8], 256
        $region64: #{tpu_custom_call.1} parent=51 // pred_fallthru
          _
        // Predicated region
        $region65: #{tpu_custom_call.1} parent=51 // pred_check
          %p340 = pneg %p196
        $region66: #{tpu_custom_call.1} parent=51 // pred_check_branch
          %342 = sbr.rel (%p340) target = $region68
        $region67: #{tpu_custom_call.1} parent=51 // pred_region
          %344 = dma.done [#allocation6], 16
        $region68: #{tpu_custom_call.1} parent=51 // pred_fallthru
          _
        %345 = sfence
        %s346 = sand.u32 %s36, 1
        %s347 = scalar_lea.sflag [#allocation4], %s346
        %s348 = sand.u32 %s36, 1
        %s349 = smul.addr %s348, 32
        %s350 = scalar_lea.vmem [#allocation3], %s349
        %p351 = pneg %p49
        %p352 = pneg %p46
        %p353 = pneg %p70
        %p354 = pneg %p67
        %p355 = pneg %p91
        %p356 = pneg %p88
        %p357 = pneg %p112
        %p358 = pneg %p109
        %p359 = pneg %p133
        %p360 = pneg %p130
        %p361 = pneg %p154
        %p362 = pneg %p151
        %p363 = pneg %p175
        %p364 = pneg %p172
        %p365 = pneg %p196
        %p366 = pneg %p193
        %p367 = pneg %p222
        %p368 = pneg %p219
        %s369 = sand.u32 %s209, 1
        %s370 = scalar_lea.sflag [#allocation5], %s369
        %s371 = sand.u32 %s209, 1
        %s372 = smul.addr %s371, 32
        %s373 = scalar_lea.vmem [#allocation11], %s372
        %v374 = vld [vmem:[%s324] sm:$0xff]
        %v375 = vld [vmem:[%s324 + $0x8] sm:$0xff]
        %v376 = vld [vmem:[%s324 + $0x10] sm:$0xff]
        %v377 = vld [vmem:[%s324 + $0x18] sm:$0xff]
        %v378 = vlaneseq
        %v379 = vand.u32 %v378, 127
        %v380 = vadd.s32 %v379, 128
        %vm381 = vcmp.lt.s32.totalorder %v379, 0
        %v382 = vsub.s32 0, %v379
        %v383 = vsel %vm381, %v382, %v379
        %v384 = vshrl.u32 %v383, 4
        %v385 = vand.u32 %v383, 15
        %v386 = vsub.s32 0, %v385
        %v387 = vsel %vm381, %v386, %v385
        %vm388 = vcmp.lt.s32.totalorder %v380, 0
        %v389 = vsub.s32 0, %v380
        %v390 = vsel %vm388, %v389, %v380
        %v391 = vshrl.u32 %v390, 4
        %v392 = vand.u32 %v390, 15
        %v393 = vsub.s32 0, %v392
        %v394 = vsel %vm388, %v393, %v392
        %vm395 = vcmp.ne.s32.totalorder %v387, 0
        %vm396 = vcmp.ne.s32.totalorder %v394, 0
        %vm397 = vcmp.lt.s32.totalorder %v387, 0
        %vm398 = vcmp.lt.s32.totalorder %v394, 0
        %vm399 = vmand %vm397, %vm395
        %vm400 = vmand %vm398, %vm396
        %v401 = vadd.s32 %v387, 16
        %v402 = vadd.s32 %v394, 16
        %v403 = vsel %vm399, %v401, %v387
        %v404 = vsel %vm400, %v402, %v394
        %vm405 = vcmp.ge.s32.totalorder %v403, 2
        %vm406 = vcmp.ge.s32.totalorder %v404, 2
        %vm407 = vcmp.ge.s32.totalorder %v403, 1
        %vm408 = vcmp.ge.s32.totalorder %v404, 1
        %vm409 = vcmp.lt.s32.totalorder %v403, 15
        %vm410 = vcmp.lt.s32.totalorder %v404, 15
        %vm411 = vcmp.lt.s32.totalorder %v403, 14
        %vm412 = vcmp.lt.s32.totalorder %v404, 14
        %s413 = sld [smem:[#allocation2]]
        %v414 = vld [vmem:[%s1] sm:$0xff]
        %v415 = vld [vmem:[%s1 + $0x8] sm:$0xff]
        %v416 = vld [vmem:[%s1 + $0x10] sm:$0xff]
        %v417 = vld [vmem:[%s1 + $0x18] sm:$0xff]
        %v418 = vsel %vm407, 1, 0
        %v419 = vsel %vm408, 1, 0
        %vm420 = vcmp.eq.s32.totalorder %v418, 1
        %vm421 = vcmp.eq.s32.totalorder %v419, 1
        %427 = vrot.lane.b32.xlu0 0.0, 17
        %v428 = vpop.permute.xlu0 %427
        %429 = vrot.lane.b32.xlu0 %v374, 17
        %v430 = vpop.permute.xlu0 %429
        %431 = vrot.lane.b32.xlu0 %v375, 17
        %v432 = vpop.permute.xlu0 %431
        %433 = vrot.lane.b32.xlu0 %v376, 17
        %v434 = vpop.permute.xlu0 %433
        %435 = vrot.lane.b32.xlu0 %v377, 17
        %v436 = vpop.permute.xlu0 %435
        %vm437 = vcmask 138240
        %v438 = vsel %vm437, %v428, %v430
        %v439 = vsel %vm437, %v430, %v432
        %v440 = vsel %vm437, %v428, %v434
        %v441 = vsel %vm437, %v434, %v436
        %v446 = vsel %vm420, %v438, 0.0
        %v447 = vsel %vm421, %v439, 0.0
        %v448 = vsel %vm420, %v440, 0.0
        %v449 = vsel %vm421, %v441, 0.0
        %v450 = vsel %vm409, 1, 0
        %v451 = vsel %vm410, 1, 0
        %vm452 = vcmp.eq.s32.totalorder %v450, 1
        %vm453 = vcmp.eq.s32.totalorder %v451, 1
        %454 = vrot.lane.b32.xlu0 0.0, 15
        %v455 = vpop.permute.xlu0 %454
        %456 = vrot.lane.b32.xlu0 %v374, 15
        %v457 = vpop.permute.xlu0 %456
        %458 = vrot.lane.b32.xlu0 %v375, 15
        %v459 = vpop.permute.xlu0 %458
        %460 = vrot.lane.b32.xlu0 %v376, 15
        %v461 = vpop.permute.xlu0 %460
        %462 = vrot.lane.b32.xlu0 %v377, 15
        %v463 = vpop.permute.xlu0 %462
        %vm464 = vcmask 121856
        %v465 = vsel %vm464, %v455, %v457
        %v466 = vsel %vm464, %v457, %v459
        %v467 = vsel %vm464, %v455, %v461
        %v468 = vsel %vm464, %v461, %v463
        %v473 = vsel %vm452, %v465, 0.0
        %v474 = vsel %vm453, %v466, 0.0
        %v475 = vsel %vm452, %v467, 0.0
        %v476 = vsel %vm453, %v468, 0.0
        %477 = vrot.lane.b32.xlu0 0.0, 1
        %v478 = vpop.permute.xlu0 %477
        %479 = vrot.lane.b32.xlu0 %v374, 1
        %v480 = vpop.permute.xlu0 %479
        %481 = vrot.lane.b32.xlu0 %v375, 1
        %v482 = vpop.permute.xlu0 %481
        %483 = vrot.lane.b32.xlu0 %v376, 1
        %v484 = vpop.permute.xlu0 %483
        %485 = vrot.lane.b32.xlu0 %v377, 1
        %v486 = vpop.permute.xlu0 %485
        %vm487 = vcmask 7168
        %v488 = vsel %vm487, %v478, %v480
        %v489 = vsel %vm487, %v480, %v482
        %v490 = vsel %vm487, %v478, %v484
        %v491 = vsel %vm487, %v484, %v486
        %v496 = vsel %vm420, %v488, 0.0
        %v497 = vsel %vm421, %v489, 0.0
        %v498 = vsel %vm420, %v490, 0.0
        %v499 = vsel %vm421, %v491, 0.0
        %500 = vrot.lane.b32.xlu0 %v374, 127
        %v501 = vpop.permute.xlu0 %500
        %502 = vrot.lane.b32.xlu0 %v375, 127
        %v503 = vpop.permute.xlu0 %502
        %504 = vrot.lane.b32.xlu0 0.0, 127
        %v505 = vpop.permute.xlu0 %504
        %506 = vrot.lane.b32.xlu0 %v376, 127
        %v507 = vpop.permute.xlu0 %506
        %508 = vrot.lane.b32.xlu0 %v377, 127
        %v509 = vpop.permute.xlu0 %508
        %vm510 = vcmask 1039360
        %v511 = vsel %vm510, %v501, %v503
        %v512 = vsel %vm510, %v503, %v505
        %v513 = vsel %vm510, %v507, %v509
        %v514 = vsel %vm510, %v509, %v505
        %v519 = vsel %vm452, %v511, 0.0
        %v520 = vsel %vm453, %v512, 0.0
        %v521 = vsel %vm452, %v513, 0.0
        %v522 = vsel %vm453, %v514, 0.0
        %523 = vrot.lane.b32.xlu0 %v374, 113
        %v524 = vpop.permute.xlu0 %523
        %525 = vrot.lane.b32.xlu0 %v375, 113
        %v526 = vpop.permute.xlu0 %525
        %527 = vrot.lane.b32.xlu0 0.0, 113
        %v528 = vpop.permute.xlu0 %527
        %529 = vrot.lane.b32.xlu0 %v376, 113
        %v530 = vpop.permute.xlu0 %529
        %531 = vrot.lane.b32.xlu0 %v377, 113
        %v532 = vpop.permute.xlu0 %531
        %vm533 = vcmask 924672
        %v534 = vsel %vm533, %v524, %v526
        %v535 = vsel %vm533, %v526, %v528
        %v536 = vsel %vm533, %v530, %v532
        %v537 = vsel %vm533, %v532, %v528
        %v542 = vsel %vm420, %v534, 0.0
        %v543 = vsel %vm421, %v535, 0.0
        %v544 = vsel %vm420, %v536, 0.0
        %v545 = vsel %vm421, %v537, 0.0
        %546 = vrot.lane.b32.xlu0 %v374, 111
        %v547 = vpop.permute.xlu0 %546
        %548 = vrot.lane.b32.xlu0 %v375, 111
        %v549 = vpop.permute.xlu0 %548
        %550 = vrot.lane.b32.xlu0 0.0, 111
        %v551 = vpop.permute.xlu0 %550
        %552 = vrot.lane.b32.xlu0 %v376, 111
        %v553 = vpop.permute.xlu0 %552
        %554 = vrot.lane.b32.xlu0 %v377, 111
        %v555 = vpop.permute.xlu0 %554
        %vm556 = vcmask 908288
        %v557 = vsel %vm556, %v547, %v549
        %v558 = vsel %vm556, %v549, %v551
        %v559 = vsel %vm556, %v553, %v555
        %v560 = vsel %vm556, %v555, %v551
        %v565 = vsel %vm452, %v557, 0.0
        %v566 = vsel %vm453, %v558, 0.0
        %v567 = vsel %vm452, %v559, 0.0
        %v568 = vsel %vm453, %v560, 0.0
        %569 = vrot.lane.b32.xlu0 0.0, 16
        %v570 = vpop.permute.xlu0 %569
        %571 = vrot.lane.b32.xlu0 %v374, 16
        %v572 = vpop.permute.xlu0 %571
        %573 = vrot.lane.b32.xlu0 %v375, 16
        %v574 = vpop.permute.xlu0 %573
        %575 = vrot.lane.b32.xlu0 %v376, 16
        %v576 = vpop.permute.xlu0 %575
        %577 = vrot.lane.b32.xlu0 %v377, 16
        %v578 = vpop.permute.xlu0 %577
        %vm579 = vcmask 130048
        %v580 = vsel %vm579, %v570, %v572
        %v581 = vsel %vm579, %v572, %v574
        %v582 = vsel %vm579, %v570, %v576
        %v583 = vsel %vm579, %v576, %v578
        %588 = vrot.lane.b32.xlu0 %v374, 112
        %v589 = vpop.permute.xlu0 %588
        %590 = vrot.lane.b32.xlu0 %v375, 112
        %v591 = vpop.permute.xlu0 %590
        %592 = vrot.lane.b32.xlu0 0.0, 112
        %v593 = vpop.permute.xlu0 %592
        %594 = vrot.lane.b32.xlu0 %v376, 112
        %v595 = vpop.permute.xlu0 %594
        %596 = vrot.lane.b32.xlu0 %v377, 112
        %v597 = vpop.permute.xlu0 %596
        %vm598 = vcmask 916480
        %v599 = vsel %vm598, %v589, %v591
        %v600 = vsel %vm598, %v591, %v593
        %v601 = vsel %vm598, %v595, %v597
        %v602 = vsel %vm598, %v597, %v593
        %v608 = vsel %vm579, %v415, 0
        %v611 = vsel %vm579, %v417, 0
        %613 = vmatpush.msra.mxu0 %v601
        %614 = vmatpush.msra.mxu0 %v599
        %615 = vmatpush.msra.mxu0 %v544
        %616 = vmatpush.msra.mxu0 %v542
        %617 = vmatpush.msra.mxu0 %v521
        %618 = vmatpush.msra.mxu0 %v519
        %619 = vmatpush.msra.mxu0 %v376
        %620 = vmatpush.msra.mxu0 %v374
        %621 = vmatpush.msra.mxu0 %v498
        %622 = vmatpush.msra.mxu0 %v496
        %623 = vmatpush.msra.mxu0 %v475
        %624 = vmatpush.msra.mxu0 %v473
        %625 = vmatpush.msra.mxu0 %v582
        %626 = vmatpush.msra.mxu0 %v580
        %627 = vmatpush.msra.mxu0 %v448
        %628 = vmatpush.msra.mxu0 %v446
        %629 = vmatmul.f32.gmra.mxu0 %v414
        %v630 = vpop.f32.mrf.mxu0
        %v631 = vadd.f32 0.0, %v630
        %632 = vmatmul.f32.gmra.mxu0 %v416
        %v633 = vpop.f32.mrf.mxu0
        %v634 = vadd.f32 0.0, %v633
        %635 = vdwg.mxu0
        %636 = vmatpush.msra.mxu0 0.0
        %637 = vmatpush.msra.mxu0 0.0
        %638 = vmatpush.msra.mxu0 0.0
        %639 = vmatpush.msra.mxu0 0.0
        %640 = vmatpush.msra.mxu0 0.0
        %641 = vmatpush.msra.mxu0 0.0
        %642 = vmatpush.msra.mxu0 0.0
        %643 = vmatpush.msra.mxu0 0.0
        %644 = vmatpush.msra.mxu0 0.0
        %645 = vmatpush.msra.mxu0 0.0
        %646 = vmatpush.msra.mxu0 0.0
        %647 = vmatpush.msra.mxu0 0.0
        %648 = vmatpush.msra.mxu0 0.0
        %649 = vmatpush.msra.mxu0 0.0
        %650 = vmatpush.msra.mxu0 %v567
        %651 = vmatpush.msra.mxu0 %v565
        %652 = vmatmul.f32.gmra.mxu0 %v608
        %v653 = vpop.f32.mrf.mxu0
        %v654 = vadd.f32 %v631, %v653
        %655 = vmatmul.f32.gmra.mxu0 %v611
        %v656 = vpop.f32.mrf.mxu0
        %v657 = vadd.f32 %v634, %v656
        %658 = vdwg.mxu0
        %659 = vmatpush.msra.mxu0 %v602
        %660 = vmatpush.msra.mxu0 %v600
        %661 = vmatpush.msra.mxu0 %v545
        %662 = vmatpush.msra.mxu0 %v543
        %663 = vmatpush.msra.mxu0 %v522
        %664 = vmatpush.msra.mxu0 %v520
        %665 = vmatpush.msra.mxu0 %v377
        %666 = vmatpush.msra.mxu0 %v375
        %667 = vmatpush.msra.mxu0 %v499
        %668 = vmatpush.msra.mxu0 %v497
        %669 = vmatpush.msra.mxu0 %v476
        %670 = vmatpush.msra.mxu0 %v474
        %671 = vmatpush.msra.mxu0 %v583
        %672 = vmatpush.msra.mxu0 %v581
        %673 = vmatpush.msra.mxu0 %v449
        %674 = vmatpush.msra.mxu0 %v447
        %675 = vmatmul.f32.gmra.mxu0 %v414
        %v676 = vpop.f32.mrf.mxu0
        %v677 = vadd.f32 0.0, %v676
        %678 = vmatmul.f32.gmra.mxu0 %v416
        %v679 = vpop.f32.mrf.mxu0
        %v680 = vadd.f32 0.0, %v679
        %681 = vdwg.mxu0
        %682 = vmatpush.msra.mxu0 0.0
        %683 = vmatpush.msra.mxu0 0.0
        %684 = vmatpush.msra.mxu0 0.0
        %685 = vmatpush.msra.mxu0 0.0
        %686 = vmatpush.msra.mxu0 0.0
        %687 = vmatpush.msra.mxu0 0.0
        %688 = vmatpush.msra.mxu0 0.0
        %689 = vmatpush.msra.mxu0 0.0
        %690 = vmatpush.msra.mxu0 0.0
        %691 = vmatpush.msra.mxu0 0.0
        %692 = vmatpush.msra.mxu0 0.0
        %693 = vmatpush.msra.mxu0 0.0
        %694 = vmatpush.msra.mxu0 0.0
        %695 = vmatpush.msra.mxu0 0.0
        %696 = vmatpush.msra.mxu0 %v568
        %697 = vmatpush.msra.mxu0 %v566
        %698 = vmatmul.f32.gmra.mxu0 %v608
        %v699 = vpop.f32.mrf.mxu0
        %v700 = vadd.f32 %v677, %v699
        %701 = vmatmul.f32.gmra.mxu0 %v611
        %v702 = vpop.f32.mrf.mxu0
        %v703 = vadd.f32 %v680, %v702
        %704 = vdwg.mxu0
        %vm705 = vcmp.ge.f32.partialorder %v654, 0.0
        %vm706 = vcmp.ge.f32.partialorder %v700, 0.0
        %vm707 = vcmp.ge.f32.partialorder %v657, 0.0
        %vm708 = vcmp.ge.f32.partialorder %v703, 0.0
        %v709 = vstv %s413
        %v710 = vmul.f32 %v709, %v654
        %v711 = vmul.f32 %v709, %v700
        %v712 = vmul.f32 %v709, %v657
        %v713 = vmul.f32 %v709, %v703
        %v714 = vsel %vm705, %v654, %v710
        %v715 = vsel %vm706, %v700, %v711
        %v716 = vsel %vm707, %v657, %v712
        %v717 = vsel %vm708, %v703, %v713
        %v718 = vld [vmem:[#allocation7] sm:$0xff]
        %v719 = vld [vmem:[#allocation7 + $0x8] sm:$0xff]
        %v720 = vld [vmem:[#allocation7 + $0x10] sm:$0xff]
        %v721 = vld [vmem:[#allocation7 + $0x18] sm:$0xff]
        %726 = vrot.lane.b32.xlu0 %v714, 17
        %v727 = vpop.permute.xlu0 %726
        %728 = vrot.lane.b32.xlu0 %v715, 17
        %v729 = vpop.permute.xlu0 %728
        %730 = vrot.lane.b32.xlu0 %v716, 17
        %v731 = vpop.permute.xlu0 %730
        %732 = vrot.lane.b32.xlu0 %v717, 17
        %v733 = vpop.permute.xlu0 %732
        %v734 = vsel %vm437, %v428, %v727
        %v735 = vsel %vm437, %v727, %v729
        %v736 = vsel %vm437, %v428, %v731
        %v737 = vsel %vm437, %v731, %v733
        %v742 = vsel %vm420, %v734, 0.0
        %v743 = vsel %vm421, %v735, 0.0
        %v744 = vsel %vm420, %v736, 0.0
        %v745 = vsel %vm421, %v737, 0.0
        %746 = vrot.lane.b32.xlu0 %v714, 15
        %v747 = vpop.permute.xlu0 %746
        %748 = vrot.lane.b32.xlu0 %v715, 15
        %v749 = vpop.permute.xlu0 %748
        %750 = vrot.lane.b32.xlu0 %v716, 15
        %v751 = vpop.permute.xlu0 %750
        %752 = vrot.lane.b32.xlu0 %v717, 15
        %v753 = vpop.permute.xlu0 %752
        %v754 = vsel %vm464, %v455, %v747
        %v755 = vsel %vm464, %v747, %v749
        %v756 = vsel %vm464, %v455, %v751
        %v757 = vsel %vm464, %v751, %v753
        %v762 = vsel %vm452, %v754, 0.0
        %v763 = vsel %vm453, %v755, 0.0
        %v764 = vsel %vm452, %v756, 0.0
        %v765 = vsel %vm453, %v757, 0.0
        %766 = vrot.lane.b32.xlu0 %v714, 1
        %v767 = vpop.permute.xlu0 %766
        %768 = vrot.lane.b32.xlu0 %v715, 1
        %v769 = vpop.permute.xlu0 %768
        %770 = vrot.lane.b32.xlu0 %v716, 1
        %v771 = vpop.permute.xlu0 %770
        %772 = vrot.lane.b32.xlu0 %v717, 1
        %v773 = vpop.permute.xlu0 %772
        %v774 = vsel %vm487, %v478, %v767
        %v775 = vsel %vm487, %v767, %v769
        %v776 = vsel %vm487, %v478, %v771
        %v777 = vsel %vm487, %v771, %v773
        %v782 = vsel %vm420, %v774, 0.0
        %v783 = vsel %vm421, %v775, 0.0
        %v784 = vsel %vm420, %v776, 0.0
        %v785 = vsel %vm421, %v777, 0.0
        %786 = vrot.lane.b32.xlu0 %v714, 127
        %v787 = vpop.permute.xlu0 %786
        %788 = vrot.lane.b32.xlu0 %v715, 127
        %v789 = vpop.permute.xlu0 %788
        %790 = vrot.lane.b32.xlu0 %v716, 127
        %v791 = vpop.permute.xlu0 %790
        %792 = vrot.lane.b32.xlu0 %v717, 127
        %v793 = vpop.permute.xlu0 %792
        %v794 = vsel %vm510, %v787, %v789
        %v795 = vsel %vm510, %v789, %v505
        %v796 = vsel %vm510, %v791, %v793
        %v797 = vsel %vm510, %v793, %v505
        %v802 = vsel %vm452, %v794, 0.0
        %v803 = vsel %vm453, %v795, 0.0
        %v804 = vsel %vm452, %v796, 0.0
        %v805 = vsel %vm453, %v797, 0.0
        %806 = vrot.lane.b32.xlu0 %v714, 113
        %v807 = vpop.permute.xlu0 %806
        %808 = vrot.lane.b32.xlu0 %v715, 113
        %v809 = vpop.permute.xlu0 %808
        %810 = vrot.lane.b32.xlu0 %v716, 113
        %v811 = vpop.permute.xlu0 %810
        %812 = vrot.lane.b32.xlu0 %v717, 113
        %v813 = vpop.permute.xlu0 %812
        %v814 = vsel %vm533, %v807, %v809
        %v815 = vsel %vm533, %v809, %v528
        %v816 = vsel %vm533, %v811, %v813
        %v817 = vsel %vm533, %v813, %v528
        %v822 = vsel %vm420, %v814, 0.0
        %v823 = vsel %vm421, %v815, 0.0
        %v824 = vsel %vm420, %v816, 0.0
        %v825 = vsel %vm421, %v817, 0.0
        %826 = vrot.lane.b32.xlu0 %v714, 111
        %v827 = vpop.permute.xlu0 %826
        %828 = vrot.lane.b32.xlu0 %v715, 111
        %v829 = vpop.permute.xlu0 %828
        %830 = vrot.lane.b32.xlu0 %v716, 111
        %v831 = vpop.permute.xlu0 %830
        %832 = vrot.lane.b32.xlu0 %v717, 111
        %v833 = vpop.permute.xlu0 %832
        %v834 = vsel %vm556, %v827, %v829
        %v835 = vsel %vm556, %v829, %v551
        %v836 = vsel %vm556, %v831, %v833
        %v837 = vsel %vm556, %v833, %v551
        %v842 = vsel %vm452, %v834, 0.0
        %v843 = vsel %vm453, %v835, 0.0
        %v844 = vsel %vm452, %v836, 0.0
        %v845 = vsel %vm453, %v837, 0.0
        %846 = vrot.lane.b32.xlu0 %v714, 16
        %v847 = vpop.permute.xlu0 %846
        %848 = vrot.lane.b32.xlu0 %v715, 16
        %v849 = vpop.permute.xlu0 %848
        %850 = vrot.lane.b32.xlu0 %v716, 16
        %v851 = vpop.permute.xlu0 %850
        %852 = vrot.lane.b32.xlu0 %v717, 16
        %v853 = vpop.permute.xlu0 %852
        %v854 = vsel %vm579, %v570, %v847
        %v855 = vsel %vm579, %v847, %v849
        %v856 = vsel %vm579, %v570, %v851
        %v857 = vsel %vm579, %v851, %v853
        %862 = vrot.lane.b32.xlu0 %v714, 112
        %v863 = vpop.permute.xlu0 %862
        %864 = vrot.lane.b32.xlu0 %v715, 112
        %v865 = vpop.permute.xlu0 %864
        %866 = vrot.lane.b32.xlu0 %v716, 112
        %v867 = vpop.permute.xlu0 %866
        %868 = vrot.lane.b32.xlu0 %v717, 112
        %v869 = vpop.permute.xlu0 %868
        %v870 = vsel %vm598, %v863, %v865
        %v871 = vsel %vm598, %v865, %v593
        %v872 = vsel %vm598, %v867, %v869
        %v873 = vsel %vm598, %v869, %v593
        %v879 = vsel %vm579, %v719, 0
        %v882 = vsel %vm579, %v721, 0
        %884 = vmatpush.msra.mxu0 %v872
        %885 = vmatpush.msra.mxu0 %v870
        %886 = vmatpush.msra.mxu0 %v824
        %887 = vmatpush.msra.mxu0 %v822
        %888 = vmatpush.msra.mxu0 %v804
        %889 = vmatpush.msra.mxu0 %v802
        %890 = vmatpush.msra.mxu0 %v716
        %891 = vmatpush.msra.mxu0 %v714
        %892 = vmatpush.msra.mxu0 %v784
        %893 = vmatpush.msra.mxu0 %v782
        %894 = vmatpush.msra.mxu0 %v764
        %895 = vmatpush.msra.mxu0 %v762
        %896 = vmatpush.msra.mxu0 %v856
        %897 = vmatpush.msra.mxu0 %v854
        %898 = vmatpush.msra.mxu0 %v744
        %899 = vmatpush.msra.mxu0 %v742
        %900 = vmatmul.f32.gmra.mxu0 %v718
        %v901 = vpop.f32.mrf.mxu0
        %v902 = vadd.f32 0.0, %v901
        %903 = vmatmul.f32.gmra.mxu0 %v720
        %v904 = vpop.f32.mrf.mxu0
        %v905 = vadd.f32 0.0, %v904
        %906 = vdwg.mxu0
        %907 = vmatpush.msra.mxu0 0.0
        %908 = vmatpush.msra.mxu0 0.0
        %909 = vmatpush.msra.mxu0 0.0
        %910 = vmatpush.msra.mxu0 0.0
        %911 = vmatpush.msra.mxu0 0.0
        %912 = vmatpush.msra.mxu0 0.0
        %913 = vmatpush.msra.mxu0 0.0
        %914 = vmatpush.msra.mxu0 0.0
        %915 = vmatpush.msra.mxu0 0.0
        %916 = vmatpush.msra.mxu0 0.0
        %917 = vmatpush.msra.mxu0 0.0
        %918 = vmatpush.msra.mxu0 0.0
        %919 = vmatpush.msra.mxu0 0.0
        %920 = vmatpush.msra.mxu0 0.0
        %921 = vmatpush.msra.mxu0 %v844
        %922 = vmatpush.msra.mxu0 %v842
        %923 = vmatmul.f32.gmra.mxu0 %v879
        %v924 = vpop.f32.mrf.mxu0
        %v925 = vadd.f32 %v902, %v924
        %926 = vmatmul.f32.gmra.mxu0 %v882
        %v927 = vpop.f32.mrf.mxu0
        %v928 = vadd.f32 %v905, %v927
        %929 = vdwg.mxu0
        %930 = vmatpush.msra.mxu0 %v873
        %931 = vmatpush.msra.mxu0 %v871
        %932 = vmatpush.msra.mxu0 %v825
        %933 = vmatpush.msra.mxu0 %v823
        %934 = vmatpush.msra.mxu0 %v805
        %935 = vmatpush.msra.mxu0 %v803
        %936 = vmatpush.msra.mxu0 %v717
        %937 = vmatpush.msra.mxu0 %v715
        %938 = vmatpush.msra.mxu0 %v785
        %939 = vmatpush.msra.mxu0 %v783
        %940 = vmatpush.msra.mxu0 %v765
        %941 = vmatpush.msra.mxu0 %v763
        %942 = vmatpush.msra.mxu0 %v857
        %943 = vmatpush.msra.mxu0 %v855
        %944 = vmatpush.msra.mxu0 %v745
        %945 = vmatpush.msra.mxu0 %v743
        %946 = vmatmul.f32.gmra.mxu0 %v718
        %v947 = vpop.f32.mrf.mxu0
        %v948 = vadd.f32 0.0, %v947
        %949 = vmatmul.f32.gmra.mxu0 %v720
        %v950 = vpop.f32.mrf.mxu0
        %v951 = vadd.f32 0.0, %v950
        %952 = vdwg.mxu0
        %953 = vmatpush.msra.mxu0 0.0
        %954 = vmatpush.msra.mxu0 0.0
        %955 = vmatpush.msra.mxu0 0.0
        %956 = vmatpush.msra.mxu0 0.0
        %957 = vmatpush.msra.mxu0 0.0
        %958 = vmatpush.msra.mxu0 0.0
        %959 = vmatpush.msra.mxu0 0.0
        %960 = vmatpush.msra.mxu0 0.0
        %961 = vmatpush.msra.mxu0 0.0
        %962 = vmatpush.msra.mxu0 0.0
        %963 = vmatpush.msra.mxu0 0.0
        %964 = vmatpush.msra.mxu0 0.0
        %965 = vmatpush.msra.mxu0 0.0
        %966 = vmatpush.msra.mxu0 0.0
        %967 = vmatpush.msra.mxu0 %v845
        %968 = vmatpush.msra.mxu0 %v843
        %969 = vmatmul.f32.gmra.mxu0 %v879
        %v970 = vpop.f32.mrf.mxu0
        %v971 = vadd.f32 %v948, %v970
        %972 = vmatmul.f32.gmra.mxu0 %v882
        %v973 = vpop.f32.mrf.mxu0
        %v974 = vadd.f32 %v951, %v973
        %975 = vdwg.mxu0
        %v976 = vmax.f32 %v925, %v928
        %v977 = vrot.slane %v976, 4
        %v978 = vmax.f32 %v976, %v977
        %v979 = vrot.slane %v978, 2
        %v980 = vmax.f32 %v978, %v979
        %v981 = vrot.slane %v980, 1
        %v982 = vmax.f32 %v980, %v981
        %v983 = vmax.f32 %v971, %v974
        %v984 = vrot.slane %v983, 4
        %v985 = vmax.f32 %v983, %v984
        %v986 = vrot.slane %v985, 2
        %v987 = vmax.f32 %v985, %v986
        %v988 = vrot.slane %v987, 1
        %v989 = vmax.f32 %v987, %v988
        %v990 = vadd.f32 %v925, %v928
        %v991 = vrot.slane %v990, 4
        %v992 = vadd.f32 %v990, %v991
        %v993 = vrot.slane %v992, 2
        %v994 = vadd.f32 %v992, %v993
        %v995 = vrot.slane %v994, 1
        %v996 = vadd.f32 %v994, %v995
        %v997 = vadd.f32 %v971, %v974
        %v998 = vrot.slane %v997, 4
        %v999 = vadd.f32 %v997, %v998
        %v1000 = vrot.slane %v999, 2
        %v1001 = vadd.f32 %v999, %v1000
        %v1002 = vrot.slane %v1001, 1
        %v1003 = vadd.f32 %v1001, %v1002
        %v1004 = vrcp.pop 16.0
        %v1005 = vmul.f32 16.0, %v1004
        %v1006 = vsub.f32 1.0, %v1005
        %v1007 = vmul.f32 %v1004, %v1006
        %v1008 = vadd.f32 %v1004, %v1007
        %vm1009 = vweird.f32 %v1004
        %v1010 = vsel %vm1009, %v1004, %v1008
        %v1011 = vmul.f32 %v996, %v1010
        %v1012 = vmul.f32 %v1003, %v1010
        %vm1013 = vcmask 1040384
        %v1014 = vsel %vm1013, %v982, %v1011
        %v1015 = vsel %vm1013, %v989, %v1012
        %v1016 = vsel %vm405, 1, 0
        %v1017 = vsel %vm406, 1, 0
        %vm1018 = vcmp.eq.s32.totalorder %v1016, 1
        %vm1019 = vcmp.eq.s32.totalorder %v1017, 1
        %1022 = vrot.lane.b32.xlu0 0.0, 34
        %v1023 = vpop.permute.xlu0 %1022
        %1024 = vrot.lane.b32.xlu0 %v1014, 34
        %v1025 = vpop.permute.xlu0 %1024
        %1026 = vrot.lane.b32.xlu0 %v1015, 34
        %v1027 = vpop.permute.xlu0 %1026
        %vm1028 = vcmask 277504
        %v1029 = vsel %vm1028, %v1023, %v1025
        %v1030 = vsel %vm1028, %v1025, %v1027
        %v1033 = vsel %vm1018, %v1029, 0.0
        %v1034 = vsel %vm1019, %v1030, 0.0
        %s1035 = sld [smem:[#allocation10]]
        %v1036 = vstv %s1035
        %v1037 = vmul.f32 %v1036, %v1033
        %v1038 = vmul.f32 %v1036, %v1034
        %s1039 = sld [smem:[#allocation10 + $0x1]]
        %v1040 = vstv %s1039
        %v1041 = vmul.f32 %v1040, %v1033
        %v1042 = vmul.f32 %v1040, %v1034
        %v1045 = vrot.slane %v1041, 1
        %v1046 = vrot.slane %v1042, 1
        %v1049 = vadd.f32 %v1037, %v1045
        %v1050 = vadd.f32 %v1038, %v1046
        %v1051 = vadd.f32 %v1049, 0.0
        %v1052 = vadd.f32 %v1050, 0.0
        %1053 = vrot.lane.b32.xlu0 0.0, 33
        %v1054 = vpop.permute.xlu0 %1053
        %1055 = vrot.lane.b32.xlu0 %v1014, 33
        %v1056 = vpop.permute.xlu0 %1055
        %1057 = vrot.lane.b32.xlu0 %v1015, 33
        %v1058 = vpop.permute.xlu0 %1057
        %vm1059 = vcmask 269312
        %v1060 = vsel %vm1059, %v1054, %v1056
        %v1061 = vsel %vm1059, %v1056, %v1058
        %v1064 = vsel %vm420, %v1060, 0.0
        %v1065 = vsel %vm421, %v1061, 0.0
        %s1066 = sld [smem:[#allocation10 + $0x2]]
        %v1067 = vstv %s1066
        %v1068 = vmul.f32 %v1067, %v1064
        %v1069 = vmul.f32 %v1067, %v1065
        %s1070 = sld [smem:[#allocation10 + $0x3]]
        %v1071 = vstv %s1070
        %v1072 = vmul.f32 %v1071, %v1064
        %v1073 = vmul.f32 %v1071, %v1065
        %v1076 = vrot.slane %v1072, 1
        %v1077 = vrot.slane %v1073, 1
        %v1080 = vadd.f32 %v1068, %v1076
        %v1081 = vadd.f32 %v1069, %v1077
        %v1082 = vadd.f32 %v1051, %v1080
        %v1083 = vadd.f32 %v1052, %v1081
        %s1084 = sld [smem:[#allocation10 + $0x4]]
        %v1085 = vstv %s1084
        %v1086 = vmul.f32 %v1085, 0.0
        %v1087 = vmul.f32 %v1085, %v1014
        %v1088 = vmul.f32 %v1085, %v1015
        %s1089 = sld [smem:[#allocation10 + $0x5]]
        %v1090 = vstv %s1089
        %v1091 = vmul.f32 %v1090, 0.0
        %v1092 = vmul.f32 %v1090, %v1014
        %v1093 = vmul.f32 %v1090, %v1015
        %v1097 = vrot.slane %v1091, 1
        %v1098 = vrot.slane %v1092, 1
        %v1099 = vrot.slane %v1093, 1
        %v1103 = vadd.f32 %v1086, %v1097
        %v1104 = vadd.f32 %v1087, %v1098
        %v1105 = vadd.f32 %v1088, %v1099
        %1109 = vrot.lane.b32.xlu0 %v1103, 32
        %v1110 = vpop.permute.xlu0 %1109
        %1111 = vrot.lane.b32.xlu0 %v1104, 32
        %v1112 = vpop.permute.xlu0 %1111
        %1113 = vrot.lane.b32.xlu0 %v1105, 32
        %v1114 = vpop.permute.xlu0 %1113
        %vm1115 = vcmask 261120
        %v1116 = vsel %vm1115, %v1110, %v1112
        %v1117 = vsel %vm1115, %v1112, %v1114
        %v1120 = vadd.f32 %v1082, %v1116
        %v1121 = vadd.f32 %v1083, %v1117
        %1122 = vrot.lane.b32.xlu0 0.0, 31
        %v1123 = vpop.permute.xlu0 %1122
        %1124 = vrot.lane.b32.xlu0 %v1014, 31
        %v1125 = vpop.permute.xlu0 %1124
        %1126 = vrot.lane.b32.xlu0 %v1015, 31
        %v1127 = vpop.permute.xlu0 %1126
        %vm1128 = vcmask 252928
        %v1129 = vsel %vm1128, %v1123, %v1125
        %v1130 = vsel %vm1128, %v1125, %v1127
        %v1133 = vsel %vm452, %v1129, 0.0
        %v1134 = vsel %vm453, %v1130, 0.0
        %s1135 = sld [smem:[#allocation10 + $0x6]]
        %v1136 = vstv %s1135
        %v1137 = vmul.f32 %v1136, %v1133
        %v1138 = vmul.f32 %v1136, %v1134
        %s1139 = sld [smem:[#allocation10 + $0x7]]
        %v1140 = vstv %s1139
        %v1141 = vmul.f32 %v1140, %v1133
        %v1142 = vmul.f32 %v1140, %v1134
        %v1145 = vrot.slane %v1141, 1
        %v1146 = vrot.slane %v1142, 1
        %v1149 = vadd.f32 %v1137, %v1145
        %v1150 = vadd.f32 %v1138, %v1146
        %v1151 = vadd.f32 %v1120, %v1149
        %v1152 = vadd.f32 %v1121, %v1150
        %v1153 = vsel %vm411, 1, 0
        %v1154 = vsel %vm412, 1, 0
        %vm1155 = vcmp.eq.s32.totalorder %v1153, 1
        %vm1156 = vcmp.eq.s32.totalorder %v1154, 1
        %1157 = vrot.lane.b32.xlu0 0.0, 30
        %v1158 = vpop.permute.xlu0 %1157
        %1159 = vrot.lane.b32.xlu0 %v1014, 30
        %v1160 = vpop.permute.xlu0 %1159
        %1161 = vrot.lane.b32.xlu0 %v1015, 30
        %v1162 = vpop.permute.xlu0 %1161
        %vm1163 = vcmask 244736
        %v1164 = vsel %vm1163, %v1158, %v1160
        %v1165 = vsel %vm1163, %v1160, %v1162
        %v1168 = vsel %vm1155, %v1164, 0.0
        %v1169 = vsel %vm1156, %v1165, 0.0
        %s1170 = sld [smem:[#allocation10 + $0x8]]
        %v1171 = vstv %s1170
        %v1172 = vmul.f32 %v1171, %v1168
        %v1173 = vmul.f32 %v1171, %v1169
        %s1174 = sld [smem:[#allocation10 + $0x9]]
        %v1175 = vstv %s1174
        %v1176 = vmul.f32 %v1175, %v1168
        %v1177 = vmul.f32 %v1175, %v1169
        %v1180 = vrot.slane %v1176, 1
        %v1181 = vrot.slane %v1177, 1
        %v1184 = vadd.f32 %v1172, %v1180
        %v1185 = vadd.f32 %v1173, %v1181
        %v1186 = vadd.f32 %v1151, %v1184
        %v1187 = vadd.f32 %v1152, %v1185
        %1188 = vrot.lane.b32.xlu0 0.0, 18
        %v1189 = vpop.permute.xlu0 %1188
        %1190 = vrot.lane.b32.xlu0 %v1014, 18
        %v1191 = vpop.permute.xlu0 %1190
        %1192 = vrot.lane.b32.xlu0 %v1015, 18
        %v1193 = vpop.permute.xlu0 %1192
        %vm1194 = vcmask 146432
        %v1195 = vsel %vm1194, %v1189, %v1191
        %v1196 = vsel %vm1194, %v1191, %v1193
        %v1199 = vsel %vm1018, %v1195, 0.0
        %v1200 = vsel %vm1019, %v1196, 0.0
        %s1201 = sld [smem:[#allocation10 + $0xa]]
        %v1202 = vstv %s1201
        %v1203 = vmul.f32 %v1202, %v1199
        %v1204 = vmul.f32 %v1202, %v1200
        %s1205 = sld [smem:[#allocation10 + $0xb]]
        %v1206 = vstv %s1205
        %v1207 = vmul.f32 %v1206, %v1199
        %v1208 = vmul.f32 %v1206, %v1200
        %v1211 = vrot.slane %v1207, 1
        %v1212 = vrot.slane %v1208, 1
        %v1215 = vadd.f32 %v1203, %v1211
        %v1216 = vadd.f32 %v1204, %v1212
        %v1217 = vadd.f32 %v1186, %v1215
        %v1218 = vadd.f32 %v1187, %v1216
        %1219 = vrot.lane.b32.xlu0 %v1014, 17
        %v1220 = vpop.permute.xlu0 %1219
        %1221 = vrot.lane.b32.xlu0 %v1015, 17
        %v1222 = vpop.permute.xlu0 %1221
        %v1223 = vsel %vm437, %v428, %v1220
        %v1224 = vsel %vm437, %v1220, %v1222
        %v1227 = vsel %vm420, %v1223, 0.0
        %v1228 = vsel %vm421, %v1224, 0.0
        %s1229 = sld [smem:[#allocation10 + $0xc]]
        %v1230 = vstv %s1229
        %v1231 = vmul.f32 %v1230, %v1227
        %v1232 = vmul.f32 %v1230, %v1228
        %s1233 = sld [smem:[#allocation10 + $0xd]]
        %v1234 = vstv %s1233
        %v1235 = vmul.f32 %v1234, %v1227
        %v1236 = vmul.f32 %v1234, %v1228
        %v1239 = vrot.slane %v1235, 1
        %v1240 = vrot.slane %v1236, 1
        %v1243 = vadd.f32 %v1231, %v1239
        %v1244 = vadd.f32 %v1232, %v1240
        %v1245 = vadd.f32 %v1217, %v1243
        %v1246 = vadd.f32 %v1218, %v1244
        %s1247 = sld [smem:[#allocation10 + $0xe]]
        %v1248 = vstv %s1247
        %v1249 = vmul.f32 %v1248, 0.0
        %v1250 = vmul.f32 %v1248, %v1014
        %v1251 = vmul.f32 %v1248, %v1015
        %s1252 = sld [smem:[#allocation10 + $0xf]]
        %v1253 = vstv %s1252
        %v1254 = vmul.f32 %v1253, 0.0
        %v1255 = vmul.f32 %v1253, %v1014
        %v1256 = vmul.f32 %v1253, %v1015
        %v1260 = vrot.slane %v1254, 1
        %v1261 = vrot.slane %v1255, 1
        %v1262 = vrot.slane %v1256, 1
        %v1266 = vadd.f32 %v1249, %v1260
        %v1267 = vadd.f32 %v1250, %v1261
        %v1268 = vadd.f32 %v1251, %v1262
        %1272 = vrot.lane.b32.xlu0 %v1266, 16
        %v1273 = vpop.permute.xlu0 %1272
        %1274 = vrot.lane.b32.xlu0 %v1267, 16
        %v1275 = vpop.permute.xlu0 %1274
        %1276 = vrot.lane.b32.xlu0 %v1268, 16
        %v1277 = vpop.permute.xlu0 %1276
        %v1278 = vsel %vm579, %v1273, %v1275
        %v1279 = vsel %vm579, %v1275, %v1277
        %v1282 = vadd.f32 %v1245, %v1278
        %v1283 = vadd.f32 %v1246, %v1279
        %1284 = vrot.lane.b32.xlu0 %v1014, 15
        %v1285 = vpop.permute.xlu0 %1284
        %1286 = vrot.lane.b32.xlu0 %v1015, 15
        %v1287 = vpop.permute.xlu0 %1286
        %v1288 = vsel %vm464, %v455, %v1285
        %v1289 = vsel %vm464, %v1285, %v1287
        %v1292 = vsel %vm452, %v1288, 0.0
        %v1293 = vsel %vm453, %v1289, 0.0
        %s1294 = sld [smem:[#allocation10 + $0x10]]
        %v1295 = vstv %s1294
        %v1296 = vmul.f32 %v1295, %v1292
        %v1297 = vmul.f32 %v1295, %v1293
        %s1298 = sld [smem:[#allocation10 + $0x11]]
        %v1299 = vstv %s1298
        %v1300 = vmul.f32 %v1299, %v1292
        %v1301 = vmul.f32 %v1299, %v1293
        %v1304 = vrot.slane %v1300, 1
        %v1305 = vrot.slane %v1301, 1
        %v1308 = vadd.f32 %v1296, %v1304
        %v1309 = vadd.f32 %v1297, %v1305
        %v1310 = vadd.f32 %v1282, %v1308
        %v1311 = vadd.f32 %v1283, %v1309
        %1312 = vrot.lane.b32.xlu0 0.0, 14
        %v1313 = vpop.permute.xlu0 %1312
        %1314 = vrot.lane.b32.xlu0 %v1014, 14
        %v1315 = vpop.permute.xlu0 %1314
        %1316 = vrot.lane.b32.xlu0 %v1015, 14
        %v1317 = vpop.permute.xlu0 %1316
        %vm1318 = vcmask 113664
        %v1319 = vsel %vm1318, %v1313, %v1315
        %v1320 = vsel %vm1318, %v1315, %v1317
        %v1323 = vsel %vm1155, %v1319, 0.0
        %v1324 = vsel %vm1156, %v1320, 0.0
        %s1325 = sld [smem:[#allocation10 + $0x12]]
        %v1326 = vstv %s1325
        %v1327 = vmul.f32 %v1326, %v1323
        %v1328 = vmul.f32 %v1326, %v1324
        %s1329 = sld [smem:[#allocation10 + $0x13]]
        %v1330 = vstv %s1329
        %v1331 = vmul.f32 %v1330, %v1323
        %v1332 = vmul.f32 %v1330, %v1324
        %v1335 = vrot.slane %v1331, 1
        %v1336 = vrot.slane %v1332, 1
        %v1339 = vadd.f32 %v1327, %v1335
        %v1340 = vadd.f32 %v1328, %v1336
        %v1341 = vadd.f32 %v1310, %v1339
        %v1342 = vadd.f32 %v1311, %v1340
        %1343 = vrot.lane.b32.xlu0 0.0, 2
        %v1344 = vpop.permute.xlu0 %1343
        %1345 = vrot.lane.b32.xlu0 %v1014, 2
        %v1346 = vpop.permute.xlu0 %1345
        %1347 = vrot.lane.b32.xlu0 %v1015, 2
        %v1348 = vpop.permute.xlu0 %1347
        %vm1349 = vcmask 15360
        %v1350 = vsel %vm1349, %v1344, %v1346
        %v1351 = vsel %vm1349, %v1346, %v1348
        %v1354 = vsel %vm1018, %v1350, 0.0
        %v1355 = vsel %vm1019, %v1351, 0.0
        %s1356 = sld [smem:[#allocation10 + $0x14]]
        %v1357 = vstv %s1356
        %v1358 = vmul.f32 %v1357, %v1354
        %v1359 = vmul.f32 %v1357, %v1355
        %s1360 = sld [smem:[#allocation10 + $0x15]]
        %v1361 = vstv %s1360
        %v1362 = vmul.f32 %v1361, %v1354
        %v1363 = vmul.f32 %v1361, %v1355
        %v1366 = vrot.slane %v1362, 1
        %v1367 = vrot.slane %v1363, 1
        %v1370 = vadd.f32 %v1358, %v1366
        %v1371 = vadd.f32 %v1359, %v1367
        %v1372 = vadd.f32 %v1341, %v1370
        %v1373 = vadd.f32 %v1342, %v1371
        %1374 = vrot.lane.b32.xlu0 %v1014, 1
        %v1375 = vpop.permute.xlu0 %1374
        %1376 = vrot.lane.b32.xlu0 %v1015, 1
        %v1377 = vpop.permute.xlu0 %1376
        %v1378 = vsel %vm487, %v478, %v1375
        %v1379 = vsel %vm487, %v1375, %v1377
        %v1382 = vsel %vm420, %v1378, 0.0
        %v1383 = vsel %vm421, %v1379, 0.0
        %s1384 = sld [smem:[#allocation10 + $0x16]]
        %v1385 = vstv %s1384
        %v1386 = vmul.f32 %v1385, %v1382
        %v1387 = vmul.f32 %v1385, %v1383
        %s1388 = sld [smem:[#allocation10 + $0x17]]
        %v1389 = vstv %s1388
        %v1390 = vmul.f32 %v1389, %v1382
        %v1391 = vmul.f32 %v1389, %v1383
        %v1394 = vrot.slane %v1390, 1
        %v1395 = vrot.slane %v1391, 1
        %v1398 = vadd.f32 %v1386, %v1394
        %v1399 = vadd.f32 %v1387, %v1395
        %v1400 = vadd.f32 %v1372, %v1398
        %v1401 = vadd.f32 %v1373, %v1399
        %s1402 = sld [smem:[#allocation10 + $0x18]]
        %v1403 = vstv %s1402
        %v1404 = vmul.f32 %v1403, %v1014
        %v1405 = vmul.f32 %v1403, %v1015
        %s1406 = sld [smem:[#allocation10 + $0x19]]
        %v1407 = vstv %s1406
        %v1408 = vmul.f32 %v1407, %v1014
        %v1409 = vmul.f32 %v1407, %v1015
        %v1412 = vrot.slane %v1408, 1
        %v1413 = vrot.slane %v1409, 1
        %v1416 = vadd.f32 %v1404, %v1412
        %v1417 = vadd.f32 %v1405, %v1413
        %v1418 = vadd.f32 %v1400, %v1416
        %v1419 = vadd.f32 %v1401, %v1417
        %1420 = vrot.lane.b32.xlu0 %v1014, 127
        %v1421 = vpop.permute.xlu0 %1420
        %1422 = vrot.lane.b32.xlu0 %v1015, 127
        %v1423 = vpop.permute.xlu0 %1422
        %v1424 = vsel %vm510, %v1421, %v1423
        %v1425 = vsel %vm510, %v1423, %v505
        %v1428 = vsel %vm452, %v1424, 0.0
        %v1429 = vsel %vm453, %v1425, 0.0
        %s1430 = sld [smem:[#allocation10 + $0x1a]]
        %v1431 = vstv %s1430
        %v1432 = vmul.f32 %v1431, %v1428
        %v1433 = vmul.f32 %v1431, %v1429
        %s1434 = sld [smem:[#allocation10 + $0x1b]]
        %v1435 = vstv %s1434
        %v1436 = vmul.f32 %v1435, %v1428
        %v1437 = vmul.f32 %v1435, %v1429
        %v1440 = vrot.slane %v1436, 1
        %v1441 = vrot.slane %v1437, 1
        %v1444 = vadd.f32 %v1432, %v1440
        %v1445 = vadd.f32 %v1433, %v1441
        %v1446 = vadd.f32 %v1418, %v1444
        %v1447 = vadd.f32 %v1419, %v1445
        %1448 = vrot.lane.b32.xlu0 %v1014, 126
        %v1449 = vpop.permute.xlu0 %1448
        %1450 = vrot.lane.b32.xlu0 %v1015, 126
        %v1451 = vpop.permute.xlu0 %1450
        %1452 = vrot.lane.b32.xlu0 0.0, 126
        %v1453 = vpop.permute.xlu0 %1452
        %vm1454 = vcmask 1031168
        %v1455 = vsel %vm1454, %v1449, %v1451
        %v1456 = vsel %vm1454, %v1451, %v1453
        %v1459 = vsel %vm1155, %v1455, 0.0
        %v1460 = vsel %vm1156, %v1456, 0.0
        %s1461 = sld [smem:[#allocation10 + $0x1c]]
        %v1462 = vstv %s1461
        %v1463 = vmul.f32 %v1462, %v1459
        %v1464 = vmul.f32 %v1462, %v1460
        %s1465 = sld [smem:[#allocation10 + $0x1d]]
        %v1466 = vstv %s1465
        %v1467 = vmul.f32 %v1466, %v1459
        %v1468 = vmul.f32 %v1466, %v1460
        %v1471 = vrot.slane %v1467, 1
        %v1472 = vrot.slane %v1468, 1
        %v1475 = vadd.f32 %v1463, %v1471
        %v1476 = vadd.f32 %v1464, %v1472
        %v1477 = vadd.f32 %v1446, %v1475
        %v1478 = vadd.f32 %v1447, %v1476
        %1479 = vrot.lane.b32.xlu0 %v1014, 114
        %v1480 = vpop.permute.xlu0 %1479
        %1481 = vrot.lane.b32.xlu0 %v1015, 114
        %v1482 = vpop.permute.xlu0 %1481
        %1483 = vrot.lane.b32.xlu0 0.0, 114
        %v1484 = vpop.permute.xlu0 %1483
        %vm1485 = vcmask 932864
        %v1486 = vsel %vm1485, %v1480, %v1482
        %v1487 = vsel %vm1485, %v1482, %v1484
        %v1490 = vsel %vm1018, %v1486, 0.0
        %v1491 = vsel %vm1019, %v1487, 0.0
        %s1492 = sld [smem:[#allocation10 + $0x1e]]
        %v1493 = vstv %s1492
        %v1494 = vmul.f32 %v1493, %v1490
        %v1495 = vmul.f32 %v1493, %v1491
        %s1496 = sld [smem:[#allocation10 + $0x1f]]
        %v1497 = vstv %s1496
        %v1498 = vmul.f32 %v1497, %v1490
        %v1499 = vmul.f32 %v1497, %v1491
        %v1502 = vrot.slane %v1498, 1
        %v1503 = vrot.slane %v1499, 1
        %v1506 = vadd.f32 %v1494, %v1502
        %v1507 = vadd.f32 %v1495, %v1503
        %v1508 = vadd.f32 %v1477, %v1506
        %v1509 = vadd.f32 %v1478, %v1507
        %1510 = vrot.lane.b32.xlu0 %v1014, 113
        %v1511 = vpop.permute.xlu0 %1510
        %1512 = vrot.lane.b32.xlu0 %v1015, 113
        %v1513 = vpop.permute.xlu0 %1512
        %v1514 = vsel %vm533, %v1511, %v1513
        %v1515 = vsel %vm533, %v1513, %v528
        %v1518 = vsel %vm420, %v1514, 0.0
        %v1519 = vsel %vm421, %v1515, 0.0
        %s1520 = sld [smem:[#allocation10 + $0x20]]
        %v1521 = vstv %s1520
        %v1522 = vmul.f32 %v1521, %v1518
        %v1523 = vmul.f32 %v1521, %v1519
        %s1524 = sld [smem:[#allocation10 + $0x21]]
        %v1525 = vstv %s1524
        %v1526 = vmul.f32 %v1525, %v1518
        %v1527 = vmul.f32 %v1525, %v1519
        %v1530 = vrot.slane %v1526, 1
        %v1531 = vrot.slane %v1527, 1
        %v1534 = vadd.f32 %v1522, %v1530
        %v1535 = vadd.f32 %v1523, %v1531
        %v1536 = vadd.f32 %v1508, %v1534
        %v1537 = vadd.f32 %v1509, %v1535
        %s1538 = sld [smem:[#allocation10 + $0x22]]
        %v1539 = vstv %s1538
        %v1540 = vmul.f32 %v1539, %v1014
        %v1541 = vmul.f32 %v1539, %v1015
        %v1542 = vmul.f32 %v1539, 0.0
        %s1543 = sld [smem:[#allocation10 + $0x23]]
        %v1544 = vstv %s1543
        %v1545 = vmul.f32 %v1544, %v1014
        %v1546 = vmul.f32 %v1544, %v1015
        %v1547 = vmul.f32 %v1544, 0.0
        %v1551 = vrot.slane %v1545, 1
        %v1552 = vrot.slane %v1546, 1
        %v1553 = vrot.slane %v1547, 1
        %v1557 = vadd.f32 %v1540, %v1551
        %v1558 = vadd.f32 %v1541, %v1552
        %v1559 = vadd.f32 %v1542, %v1553
        %1563 = vrot.lane.b32.xlu0 %v1557, 112
        %v1564 = vpop.permute.xlu0 %1563
        %1565 = vrot.lane.b32.xlu0 %v1558, 112
        %v1566 = vpop.permute.xlu0 %1565
        %1567 = vrot.lane.b32.xlu0 %v1559, 112
        %v1568 = vpop.permute.xlu0 %1567
        %v1569 = vsel %vm598, %v1564, %v1566
        %v1570 = vsel %vm598, %v1566, %v1568
        %v1573 = vadd.f32 %v1536, %v1569
        %v1574 = vadd.f32 %v1537, %v1570
        %1575 = vrot.lane.b32.xlu0 %v1014, 111
        %v1576 = vpop.permute.xlu0 %1575
        %1577 = vrot.lane.b32.xlu0 %v1015, 111
        %v1578 = vpop.permute.xlu0 %1577
        %v1579 = vsel %vm556, %v1576, %v1578
        %v1580 = vsel %vm556, %v1578, %v551
        %v1583 = vsel %vm452, %v1579, 0.0
        %v1584 = vsel %vm453, %v1580, 0.0
        %s1585 = sld [smem:[#allocation10 + $0x24]]
        %v1586 = vstv %s1585
        %v1587 = vmul.f32 %v1586, %v1583
        %v1588 = vmul.f32 %v1586, %v1584
        %s1589 = sld [smem:[#allocation10 + $0x25]]
        %v1590 = vstv %s1589
        %v1591 = vmul.f32 %v1590, %v1583
        %v1592 = vmul.f32 %v1590, %v1584
        %v1595 = vrot.slane %v1591, 1
        %v1596 = vrot.slane %v1592, 1
        %v1599 = vadd.f32 %v1587, %v1595
        %v1600 = vadd.f32 %v1588, %v1596
        %v1601 = vadd.f32 %v1573, %v1599
        %v1602 = vadd.f32 %v1574, %v1600
        %1603 = vrot.lane.b32.xlu0 %v1014, 110
        %v1604 = vpop.permute.xlu0 %1603
        %1605 = vrot.lane.b32.xlu0 %v1015, 110
        %v1606 = vpop.permute.xlu0 %1605
        %1607 = vrot.lane.b32.xlu0 0.0, 110
        %v1608 = vpop.permute.xlu0 %1607
        %vm1609 = vcmask 900096
        %v1610 = vsel %vm1609, %v1604, %v1606
        %v1611 = vsel %vm1609, %v1606, %v1608
        %v1614 = vsel %vm1155, %v1610, 0.0
        %v1615 = vsel %vm1156, %v1611, 0.0
        %s1616 = sld [smem:[#allocation10 + $0x26]]
        %v1617 = vstv %s1616
        %v1618 = vmul.f32 %v1617, %v1614
        %v1619 = vmul.f32 %v1617, %v1615
        %s1620 = sld [smem:[#allocation10 + $0x27]]
        %v1621 = vstv %s1620
        %v1622 = vmul.f32 %v1621, %v1614
        %v1623 = vmul.f32 %v1621, %v1615
        %v1626 = vrot.slane %v1622, 1
        %v1627 = vrot.slane %v1623, 1
        %v1630 = vadd.f32 %v1618, %v1626
        %v1631 = vadd.f32 %v1619, %v1627
        %v1632 = vadd.f32 %v1601, %v1630
        %v1633 = vadd.f32 %v1602, %v1631
        %1634 = vrot.lane.b32.xlu0 %v1014, 98
        %v1635 = vpop.permute.xlu0 %1634
        %1636 = vrot.lane.b32.xlu0 %v1015, 98
        %v1637 = vpop.permute.xlu0 %1636
        %1638 = vrot.lane.b32.xlu0 0.0, 98
        %v1639 = vpop.permute.xlu0 %1638
        %vm1640 = vcmask 801792
        %v1641 = vsel %vm1640, %v1635, %v1637
        %v1642 = vsel %vm1640, %v1637, %v1639
        %v1645 = vsel %vm1018, %v1641, 0.0
        %v1646 = vsel %vm1019, %v1642, 0.0
        %s1647 = sld [smem:[#allocation10 + $0x28]]
        %v1648 = vstv %s1647
        %v1649 = vmul.f32 %v1648, %v1645
        %v1650 = vmul.f32 %v1648, %v1646
        %s1651 = sld [smem:[#allocation10 + $0x29]]
        %v1652 = vstv %s1651
        %v1653 = vmul.f32 %v1652, %v1645
        %v1654 = vmul.f32 %v1652, %v1646
        %v1657 = vrot.slane %v1653, 1
        %v1658 = vrot.slane %v1654, 1
        %v1661 = vadd.f32 %v1649, %v1657
        %v1662 = vadd.f32 %v1650, %v1658
        %v1663 = vadd.f32 %v1632, %v1661
        %v1664 = vadd.f32 %v1633, %v1662
        %1665 = vrot.lane.b32.xlu0 %v1014, 97
        %v1666 = vpop.permute.xlu0 %1665
        %1667 = vrot.lane.b32.xlu0 %v1015, 97
        %v1668 = vpop.permute.xlu0 %1667
        %1669 = vrot.lane.b32.xlu0 0.0, 97
        %v1670 = vpop.permute.xlu0 %1669
        %vm1671 = vcmask 793600
        %v1672 = vsel %vm1671, %v1666, %v1668
        %v1673 = vsel %vm1671, %v1668, %v1670
        %v1676 = vsel %vm420, %v1672, 0.0
        %v1677 = vsel %vm421, %v1673, 0.0
        %s1678 = sld [smem:[#allocation10 + $0x2a]]
        %v1679 = vstv %s1678
        %v1680 = vmul.f32 %v1679, %v1676
        %v1681 = vmul.f32 %v1679, %v1677
        %s1682 = sld [smem:[#allocation10 + $0x2b]]
        %v1683 = vstv %s1682
        %v1684 = vmul.f32 %v1683, %v1676
        %v1685 = vmul.f32 %v1683, %v1677
        %v1688 = vrot.slane %v1684, 1
        %v1689 = vrot.slane %v1685, 1
        %v1692 = vadd.f32 %v1680, %v1688
        %v1693 = vadd.f32 %v1681, %v1689
        %v1694 = vadd.f32 %v1663, %v1692
        %v1695 = vadd.f32 %v1664, %v1693
        %s1696 = sld [smem:[#allocation10 + $0x2c]]
        %v1697 = vstv %s1696
        %v1698 = vmul.f32 %v1697, %v1014
        %v1699 = vmul.f32 %v1697, %v1015
        %v1700 = vmul.f32 %v1697, 0.0
        %s1701 = sld [smem:[#allocation10 + $0x2d]]
        %v1702 = vstv %s1701
        %v1703 = vmul.f32 %v1702, %v1014
        %v1704 = vmul.f32 %v1702, %v1015
        %v1705 = vmul.f32 %v1702, 0.0
        %v1709 = vrot.slane %v1703, 1
        %v1710 = vrot.slane %v1704, 1
        %v1711 = vrot.slane %v1705, 1
        %v1715 = vadd.f32 %v1698, %v1709
        %v1716 = vadd.f32 %v1699, %v1710
        %v1717 = vadd.f32 %v1700, %v1711
        %1721 = vrot.lane.b32.xlu0 %v1715, 96
        %v1722 = vpop.permute.xlu0 %1721
        %1723 = vrot.lane.b32.xlu0 %v1716, 96
        %v1724 = vpop.permute.xlu0 %1723
        %1725 = vrot.lane.b32.xlu0 %v1717, 96
        %v1726 = vpop.permute.xlu0 %1725
        %vm1727 = vcmask 785408
        %v1728 = vsel %vm1727, %v1722, %v1724
        %v1729 = vsel %vm1727, %v1724, %v1726
        %v1732 = vadd.f32 %v1694, %v1728
        %v1733 = vadd.f32 %v1695, %v1729
        %1734 = vrot.lane.b32.xlu0 %v1014, 95
        %v1735 = vpop.permute.xlu0 %1734
        %1736 = vrot.lane.b32.xlu0 %v1015, 95
        %v1737 = vpop.permute.xlu0 %1736
        %1738 = vrot.lane.b32.xlu0 0.0, 95
        %v1739 = vpop.permute.xlu0 %1738
        %vm1740 = vcmask 777216
        %v1741 = vsel %vm1740, %v1735, %v1737
        %v1742 = vsel %vm1740, %v1737, %v1739
        %v1745 = vsel %vm452, %v1741, 0.0
        %v1746 = vsel %vm453, %v1742, 0.0
        %s1747 = sld [smem:[#allocation10 + $0x2e]]
        %v1748 = vstv %s1747
        %v1749 = vmul.f32 %v1748, %v1745
        %v1750 = vmul.f32 %v1748, %v1746
        %s1751 = sld [smem:[#allocation10 + $0x2f]]
        %v1752 = vstv %s1751
        %v1753 = vmul.f32 %v1752, %v1745
        %v1754 = vmul.f32 %v1752, %v1746
        %v1757 = vrot.slane %v1753, 1
        %v1758 = vrot.slane %v1754, 1
        %v1761 = vadd.f32 %v1749, %v1757
        %v1762 = vadd.f32 %v1750, %v1758
        %v1763 = vadd.f32 %v1732, %v1761
        %v1764 = vadd.f32 %v1733, %v1762
        %1765 = vrot.lane.b32.xlu0 %v1014, 94
        %v1766 = vpop.permute.xlu0 %1765
        %1767 = vrot.lane.b32.xlu0 %v1015, 94
        %v1768 = vpop.permute.xlu0 %1767
        %1769 = vrot.lane.b32.xlu0 0.0, 94
        %v1770 = vpop.permute.xlu0 %1769
        %vm1771 = vcmask 769024
        %v1772 = vsel %vm1771, %v1766, %v1768
        %v1773 = vsel %vm1771, %v1768, %v1770
        %v1776 = vsel %vm1155, %v1772, 0.0
        %v1777 = vsel %vm1156, %v1773, 0.0
        %s1778 = sld [smem:[#allocation10 + $0x30]]
        %v1779 = vstv %s1778
        %v1780 = vmul.f32 %v1779, %v1776
        %v1781 = vmul.f32 %v1779, %v1777
        %s1782 = sld [smem:[#allocation10 + $0x31]]
        %v1783 = vstv %s1782
        %v1784 = vmul.f32 %v1783, %v1776
        %v1785 = vmul.f32 %v1783, %v1777
        %v1788 = vrot.slane %v1784, 1
        %v1789 = vrot.slane %v1785, 1
        %v1792 = vadd.f32 %v1780, %v1788
        %v1793 = vadd.f32 %v1781, %v1789
        %v1794 = vadd.f32 %v1763, %v1792
        %v1795 = vadd.f32 %v1764, %v1793
        %v1796 = vxor.u32 %v1794, 2147483648
        %v1797 = vxor.u32 %v1795, 2147483648
        %v1798 = vmul.f32 %v1796, 1.442695
        %v1799 = vpow.pop %v1798
        %v1800 = vmul.f32 %v1797, 1.442695
        %v1801 = vpow.pop %v1800
        %v1802 = vadd.f32 %v1799, 1.0
        %v1803 = vadd.f32 %v1801, 1.0
        %v1804 = vrcp.pop %v1802
        %v1805 = vmul.f32 %v1802, %v1804
        %v1806 = vsub.f32 1.0, %v1805
        %v1807 = vmul.f32 %v1804, %v1806
        %v1808 = vadd.f32 %v1804, %v1807
        %vm1809 = vweird.f32 %v1802
        %vm1810 = vweird.f32 %v1804
        %vm1811 = vmor %vm1809, %vm1810
        %v1812 = vsel %vm1811, %v1804, %v1808
        %v1813 = vand.u32 2147483647, %v1802
        %vm1814 = vcmp.eq.f32.partialorder %v1813, 8.507059e+37
        %v1815 = vand.u32 %v1802, 2147483648
        %v1816 = vor.u32 1.1754944e-38, %v1815
        %v1817 = vsel %vm1814, %v1816, %v1812
        %v1818 = vmul.f32 1.0, %v1817
        %v1819 = vrcp.pop %v1803
        %v1820 = vmul.f32 %v1803, %v1819
        %v1821 = vsub.f32 1.0, %v1820
        %v1822 = vmul.f32 %v1819, %v1821
        %v1823 = vadd.f32 %v1819, %v1822
        %vm1824 = vweird.f32 %v1803
        %vm1825 = vweird.f32 %v1819
        %vm1826 = vmor %vm1824, %vm1825
        %v1827 = vsel %vm1826, %v1819, %v1823
        %v1828 = vand.u32 2147483647, %v1803
        %vm1829 = vcmp.eq.f32.partialorder %v1828, 8.507059e+37
        %v1830 = vand.u32 %v1803, 2147483648
        %v1831 = vor.u32 1.1754944e-38, %v1830
        %v1832 = vsel %vm1829, %v1831, %v1827
        %v1833 = vmul.f32 1.0, %v1832
        %v1834 = vperm.slane %v1818, 0
        %v1835 = vperm.slane %v1833, 0
        %v1836 = vmul.f32 %v925, %v1834
        %v1837 = vmul.f32 %v971, %v1835
        %v1838 = vmul.f32 %v928, %v1834
        %v1839 = vmul.f32 %v974, %v1835
        %v1840 = vadd.f32 %v925, %v971
        %1841 = vadd.xlane.f32.xlu0 %v1840
        %v1842 = vpop.xlane.xlu0 %1841
        %v1843 = vadd.f32 %v928, %v974
        %1844 = vadd.xlane.f32.xlu0 %v1843
        %v1845 = vpop.xlane.xlu0 %1844
        %v1846 = vrcp.pop 256.0
        %v1847 = vmul.f32 256.0, %v1846
        %v1848 = vsub.f32 1.0, %v1847
        %v1849 = vmul.f32 %v1846, %v1848
        %v1850 = vadd.f32 %v1846, %v1849
        %vm1851 = vweird.f32 %v1846
        %v1852 = vsel %vm1851, %v1846, %v1850
        %v1853 = vmul.f32 %v1842, %v1852
        %v1854 = vmul.f32 %v1845, %v1852
        %v1855 = vld [vmem:[%s3] sm:$0xff]
        %v1856 = vld [vmem:[%s3 + $0x8] sm:$0xff]
        %v1857 = vmul.f32 %v1855, %v1853
        %v1858 = vmul.f32 %v1856, %v1854
        %v1859 = vsel %vm1349, %v1857, 0.0
        %v1860 = vsel %vm1349, %v1858, 0.0
        %v1861 = vadd.f32 %v1859, %v1860
        %v1862 = vrot.slane %v1861, 4
        %v1863 = vadd.f32 %v1861, %v1862
        %v1864 = vrot.slane %v1863, 2
        %v1865 = vadd.f32 %v1863, %v1864
        %v1866 = vrot.slane %v1865, 1
        %v1867 = vadd.f32 %v1865, %v1866
        %v1868 = vmax.f32 %v1867, 0.0
        %v1869 = vld [vmem:[%s4] sm:$0xff]
        %v1870 = vld [vmem:[%s4 + $0x8] sm:$0xff]
        %v1871 = vmul.f32 %v1869, %v1868
        %v1872 = vmul.f32 %v1870, %v1868
        %v1873 = vsel %vm1349, %v1871, 0.0
        %1874 = vadd.xlane.f32.xlu0 %v1873
        %v1875 = vpop.xlane.xlu0 %1874
        %v1876 = vsel %vm1349, %v1872, 0.0
        %1877 = vadd.xlane.f32.xlu0 %v1876
        %v1878 = vpop.xlane.xlu0 %1877
        %v1879 = vxor.u32 %v1875, 2147483648
        %v1880 = vxor.u32 %v1878, 2147483648
        %v1881 = vmul.f32 %v1879, 1.442695
        %v1882 = vpow.pop %v1881
        %v1883 = vmul.f32 %v1880, 1.442695
        %v1884 = vpow.pop %v1883
        %v1885 = vadd.f32 %v1882, 1.0
        %v1886 = vadd.f32 %v1884, 1.0
        %v1887 = vrcp.pop %v1885
        %v1888 = vmul.f32 %v1885, %v1887
        %v1889 = vsub.f32 1.0, %v1888
        %v1890 = vmul.f32 %v1887, %v1889
        %v1891 = vadd.f32 %v1887, %v1890
        %vm1892 = vweird.f32 %v1885
        %vm1893 = vweird.f32 %v1887
        %vm1894 = vmor %vm1892, %vm1893
        %v1895 = vsel %vm1894, %v1887, %v1891
        %v1896 = vand.u32 2147483647, %v1885
        %vm1897 = vcmp.eq.f32.partialorder %v1896, 8.507059e+37
        %v1898 = vand.u32 %v1885, 2147483648
        %v1899 = vor.u32 1.1754944e-38, %v1898
        %v1900 = vsel %vm1897, %v1899, %v1895
        %v1901 = vmul.f32 1.0, %v1900
        %v1902 = vrcp.pop %v1886
        %v1903 = vmul.f32 %v1886, %v1902
        %v1904 = vsub.f32 1.0, %v1903
        %v1905 = vmul.f32 %v1902, %v1904
        %v1906 = vadd.f32 %v1902, %v1905
        %vm1907 = vweird.f32 %v1886
        %vm1908 = vweird.f32 %v1902
        %vm1909 = vmor %vm1907, %vm1908
        %v1910 = vsel %vm1909, %v1902, %v1906
        %v1911 = vand.u32 2147483647, %v1886
        %vm1912 = vcmp.eq.f32.partialorder %v1911, 8.507059e+37
        %v1913 = vand.u32 %v1886, 2147483648
        %v1914 = vor.u32 1.1754944e-38, %v1913
        %v1915 = vsel %vm1912, %v1914, %v1910
        %v1916 = vmul.f32 1.0, %v1915
        %v1917 = vmul.f32 %v925, %v1901
        %v1918 = vmul.f32 %v971, %v1901
        %v1919 = vmul.f32 %v928, %v1916
        %v1920 = vmul.f32 %v974, %v1916
        %v1921 = vld [vmem:[#allocation9] sm:$0xff]
        %v1922 = vld [vmem:[#allocation9 + $0x8] sm:$0xff]
        %v1924 = vsel %vm1115, %v1921, 0
        %v1927 = vsel %vm1115, %v1922, 0
        %1929 = vmatpush.msra.mxu0 0.0
        %1930 = vmatpush.msra.mxu0 0.0
        %1931 = vmatpush.msra.mxu0 0.0
        %1932 = vmatpush.msra.mxu0 0.0
        %1933 = vmatpush.msra.mxu0 0.0
        %1934 = vmatpush.msra.mxu0 0.0
        %1935 = vmatpush.msra.mxu0 0.0
        %1936 = vmatpush.msra.mxu0 0.0
        %1937 = vmatpush.msra.mxu0 0.0
        %1938 = vmatpush.msra.mxu0 0.0
        %1939 = vmatpush.msra.mxu0 0.0
        %1940 = vmatpush.msra.mxu0 0.0
        %1941 = vmatpush.msra.mxu0 %v1919
        %1942 = vmatpush.msra.mxu0 %v1917
        %1943 = vmatpush.msra.mxu0 %v1838
        %1944 = vmatpush.msra.mxu0 %v1836
        %1945 = vmatmul.f32.gmra.mxu0 %v1924
        %v1946 = vpop.f32.mrf.mxu0
        %v1947 = vadd.f32 %v374, %v1946
        %1948 = vmatmul.f32.gmra.mxu0 %v1927
        %v1949 = vpop.f32.mrf.mxu0
        %v1950 = vadd.f32 %v376, %v1949
        %1951 = vdwg.mxu0
        %1952 = vmatpush.msra.mxu0 0.0
        %1953 = vmatpush.msra.mxu0 0.0
        %1954 = vmatpush.msra.mxu0 0.0
        %1955 = vmatpush.msra.mxu0 0.0
        %1956 = vmatpush.msra.mxu0 0.0
        %1957 = vmatpush.msra.mxu0 0.0
        %1958 = vmatpush.msra.mxu0 0.0
        %1959 = vmatpush.msra.mxu0 0.0
        %1960 = vmatpush.msra.mxu0 0.0
        %1961 = vmatpush.msra.mxu0 0.0
        %1962 = vmatpush.msra.mxu0 0.0
        %1963 = vmatpush.msra.mxu0 0.0
        %1964 = vmatpush.msra.mxu0 %v1920
        %1965 = vmatpush.msra.mxu0 %v1918
        %1966 = vmatpush.msra.mxu0 %v1839
        %1967 = vmatpush.msra.mxu0 %v1837
        %1968 = vmatmul.f32.gmra.mxu0 %v1924
        %v1969 = vpop.f32.mrf.mxu0
        %v1970 = vadd.f32 %v375, %v1969
        %1971 = vmatmul.f32.gmra.mxu0 %v1927
        %v1972 = vpop.f32.mrf.mxu0
        %v1973 = vadd.f32 %v377, %v1972
        %1974 = vdwg.mxu0
        %1975 = vst [vmem:[%s373] sm:$0xff] %v1947
        %1976 = vst [vmem:[%s373 + $0x8] sm:$0xff] %v1970
        %1977 = vst [vmem:[%s373 + $0x10] sm:$0xff] %v1950
        %1978 = vst [vmem:[%s373 + $0x18] sm:$0xff] %v1973
        %s1979 = sand.u32 %s209, 1
        %s1980 = scalar_lea.sflag [#allocation5], %s1979
        %s1981 = sand.u32 %s209, 1
        %s1982 = smul.addr %s1981, 32
        %s1983 = scalar_lea.vmem [#allocation11], %s1982
        // Predicated region
        $region69: #{tpu_custom_call.1} parent=51 // pred_check
          %p1984 = pneg %p219
        $region70: #{tpu_custom_call.1} parent=51 // pred_check_branch
          %1986 = sbr.rel (%p1984) target = $region72
        $region71: #{tpu_custom_call.1} parent=51 // pred_region
          %1988 = vsyncadd %s1980, 0
          %s1989 = smul.addr %s28, 4
          %s1990 = smul.addr %s1989, 8
          %s1991 = scalar_lea.hbm %s8, %s1990
          %s1992 = sshll.u32 %s1983, 4
          %s1993 = int_to_ptr.vmem [resolvable:$true] %s1992
          %s1994 = sshll.u32 %s1991, 4
          %s1995 = int_to_ptr.hbm [resolvable:$true] %s1994
          %2000 = dma.vmem_to_hbm [thread:$0]  %s1993, 512, %s1995, %s1980, 256, 256, 16
        $region72: #{tpu_custom_call.1} parent=51 // pred_fallthru
          _
      $region52: #{tpu_custom_call.1} parent=5 // pred_fallthru
        _
      %p2001 = scmp.le.s32.totalorder 2, %s23
      // Predicated region
      $region73: #{tpu_custom_call.1} parent=5 // pred_check
        %p2002 = pneg %p2001
      $region74: #{tpu_custom_call.1} parent=5 // pred_check_branch
        %2004 = sbr.rel (%p2002) target = $region76
      $region75: #{tpu_custom_call.1} parent=5 // pred_region
        %s2005 = ssub.s32 %s23, 2
        // Predicated region
        $region77: #{tpu_custom_call.1} parent=75 // pred_check
          %p2006 = pneg %p225
        $region78: #{tpu_custom_call.1} parent=75 // pred_check_branch
          %2008 = sbr.rel (%p2006) target = $region80
        $region79: #{tpu_custom_call.1} parent=75 // pred_region
          %s2009 = sand.u32 %s210, 1
          %s2010 = scalar_lea.sflag [#allocation5], %s2009
          %s2011 = sand.u32 %s210, 1
          %s2012 = smul.addr %s2011, 32
          %s2013 = scalar_lea.vmem [#allocation11], %s2012
          %2015 = dma.done %s2010, 512
        $region80: #{tpu_custom_call.1} parent=75 // pred_fallthru
          _
      $region76: #{tpu_custom_call.1} parent=5 // pred_fallthru
        _
    $region6: #{tpu_custom_call.1} parent=1 // loop_footer
      %s27 = sadd.s32 1, %s23
    $region7: #{tpu_custom_call.1} parent=1 // loop_footer_branch
      %22 = sbr.rel target = $region3
    $region8: #{tpu_custom_call.1} parent=1 // loop_exit
      _
    %2016 = vsyncpa [#allocation4], 1
    %s2017 = scalar_lea.sflag [#allocation4], 1
    %2018 = vsyncpa %s2017, 1
    %2019 = vsyncpa [#allocation8], 1
    %2020 = vsyncpa [#allocation5], 1
    %s2021 = scalar_lea.sflag [#allocation5], 1
    %2022 = vsyncpa %s2021, 1
    %2023 = vsyncpa [#allocation6], 1
    %s2024 = scalar_lea.sflag [#allocation6], 1
    %2025 = vsyncpa %s2024, 1

</llo_original>
